<compile_context>
chip_gen: v7x
topology: tpu7x:2x2x1
jax: 0.10.0
libtpu: 0.0.40
codegen_flags: <defaults>
</compile_context>

<pallas_src>
import math

import jax
import jax.numpy as jnp
from jax import lax
from jax.experimental import pallas as pl
from jax.experimental.pallas import tpu as pltpu

# ---- RMILoss hyper-parameters (match the PyTorch __init__ defaults) ----
NUM_CLASSES = 4
RMI_RADIUS = 3
RMI_POOL_WAY = 0          # max-pool
RMI_POOL_SIZE = 3
RMI_POOL_STRIDE = 3
LOSS_WEIGHT_LAMBDA = 0.5
LAMBDA_WAY = 1
HALF_D = RMI_RADIUS * RMI_RADIUS      # 9
FULL_D = 2 * HALF_D                   # 18 (labels + probs stacked)
CLIP_MIN = 1e-6
POS_ALPHA = 5e-4
KERNEL_PADDING = RMI_POOL_SIZE // 2   # 1
IGNORE_LABEL = 255

LANES = 128
assert LANES % NUM_CLASSES == 0
PIX_PER_ROW = LANES // NUM_CLASSES    # 32 pixels x 4 classes per 128-lane row


def _round_up(x, m):
    return (x + m - 1) // m * m


# ------------------------------------------------------------------
# Kernel 1: lane-dense fused masked-BCE partial sums, valid-pixel partial
#           counts, masked one-hot labels and probs = sigmoid(logits)*mask+eps
# ------------------------------------------------------------------
def _bce_probs_kernel(logits_ref, labels_ref,
                      pbce_ref, pcnt_ref, onehot_ref, probs_ref):
    x = logits_ref[...]                  # (T, 128) f32, 32 pixels x 4 classes/row
    lab = labels_ref[...]                # (T, 128) i32, label repeated per class lane

    # class index of every lane: 0,1,2,3,0,1,2,3,...
    cls = lax.broadcasted_iota(jnp.int32, x.shape, 1) % NUM_CLASSES
    valid = lab < NUM_CLASSES            # pixel validity (broadcast over class lanes)
    w = valid.astype(jnp.float32)
    y = jnp.where(valid & (lab == cls), 1.0, 0.0)   # one_hot(label*mask) * mask

    # numerically-stable BCE with logits (same formula PyTorch uses), weighted
    bce = (jnp.maximum(x, 0.0) - x * y + jnp.log1p(jnp.exp(-jnp.abs(x)))) * w

    # vector partial sums: pure VPU adds of (8,128) vreg chunks, no per-step
    # cross-lane reduce and no scalar-accumulator dependency across the grid.
    t = bce.shape[0]
    pbce_ref[...] = jnp.sum(bce.reshape(t // 8, 8, LANES), axis=0)[None]
    pcnt_ref[...] = jnp.sum(w.reshape(t // 8, 8, LANES), axis=0)[None]

    onehot_ref[...] = y
    probs_ref[...] = jax.nn.sigmoid(x) * w + CLIP_MIN


def bce_onehot_probs(logits_flat, labels_flat, *, target_rows=2048):
    """logits_flat: (P, C) f32, labels_flat: (P,) int32."""
    P, C = logits_flat.shape
    assert C == NUM_CLASSES

    rows = -(-P // PIX_PER_ROW)                       # ceil
    tile_rows = min(target_rows, _round_up(rows, 8))  # big tiles (~1 MiB / stream)
    rows_pad = _round_up(rows, tile_rows)
    p_pad = rows_pad * PIX_PER_ROW

    # pad to a whole number of tiles: padded pixels get label=255 -> mask 0,
    # so they contribute nothing to BCE / count; their probs are sliced away.
    if p_pad != P:
        logits_flat = jnp.pad(logits_flat, ((0, p_pad - P), (0, 0)))
        labels_flat = jnp.pad(labels_flat, ((0, p_pad - P),),
                              constant_values=IGNORE_LABEL)

    logits_dense = logits_flat.reshape(rows_pad, LANES)
    labels_dense = jnp.broadcast_to(
        labels_flat[:, None], (p_pad, C)).reshape(rows_pad, LANES)

    n_blocks = rows_pad // tile_rows
    elems = rows_pad * LANES
    cost = pl.CostEstimate(
        flops=16 * elems,
        transcendentals=3 * elems,
        bytes_accessed=4 * 4 * elems + 2 * n_blocks * 8 * LANES * 4)

    pbce, pcnt, onehot_dense, probs_dense = pl.pallas_call(
        _bce_probs_kernel,
        out_shape=(jax.ShapeDtypeStruct((n_blocks, 8, LANES), jnp.float32),
                   jax.ShapeDtypeStruct((n_blocks, 8, LANES), jnp.float32),
                   jax.ShapeDtypeStruct((rows_pad, LANES), jnp.float32),
                   jax.ShapeDtypeStruct((rows_pad, LANES), jnp.float32)),
        grid=(n_blocks,),
        in_specs=[pl.BlockSpec((tile_rows, LANES), lambda i: (i, 0)),
                  pl.BlockSpec((tile_rows, LANES), lambda i: (i, 0))],
        out_specs=(pl.BlockSpec((1, 8, LANES), lambda i: (i, 0, 0)),
                   pl.BlockSpec((1, 8, LANES), lambda i: (i, 0, 0)),
                   pl.BlockSpec((tile_rows, LANES), lambda i: (i, 0)),
                   pl.BlockSpec((tile_rows, LANES), lambda i: (i, 0))),
        compiler_params=pltpu.CompilerParams(
            dimension_semantics=("parallel",),       # independent blocks -> 2 TCs on v7x
            vmem_limit_bytes=32 * 1024 * 1024),      # safe on v5e/v6e/v7x
        cost_estimate=cost,
    )(logits_dense, labels_dense)

    bce_sum = jnp.sum(pbce)                          # tree reduce in JAX
    valid_pixels = jnp.sum(pcnt) / NUM_CLASSES       # each pixel counted C times
    onehot = onehot_dense.reshape(p_pad, C)[:P]
    probs = probs_dense.reshape(p_pad, C)[:P]
    return bce_sum, valid_pixels, onehot, probs


# ------------------------------------------------------------------
# Kernel 2: fused centered gram matrix per (n, c) on the MXU.
#   z = [la_shifts; pr_shifts]  (18, M),  gram = (z - mean) (z - mean)^T
#   -> la_cov = gram[:9,:9], pr_cov = gram[9:,9:], la_pr_cov = gram[:9,9:]
# ------------------------------------------------------------------
def _gram_kernel(z_ref, gram_ref):
    z = z_ref[...]                                     # (18, M)
    z = z - jnp.mean(z, axis=1, keepdims=True)
    gram_ref[...] = lax.dot_general(z, z, (((1,), (1,)), ((), ())),
                                    preferred_element_type=jnp.float32)


def centered_gram(z_vec):
    # TODO(synk): for extremely large pooled maps (M > ~200K) the full-M block
    #             should be K-tiled with an (18,18) accumulator; full-M keeps
    #             the exact mean-centered formulation and fits 32 MiB VMEM for
    #             all realistic image sizes.
    N, C, D2, M = z_vec.shape
    cost = pl.CostEstimate(
        flops=2 * N * C * D2 * D2 * M,
        transcendentals=0,
        bytes_accessed=4 * N * C * (D2 * M + D2 * D2))
    return pl.pallas_call(
        _gram_kernel,
        out_shape=jax.ShapeDtypeStruct((N, C, D2, D2), jnp.float32),
        grid=(N, C),
        in_specs=[pl.BlockSpec((None, None, D2, M), lambda n, c: (n, c, 0, 0))],
        out_specs=pl.BlockSpec((None, None, D2, D2), lambda n, c: (n, c, 0, 0)),
        compiler_params=pltpu.CompilerParams(
            dimension_semantics=("parallel", "parallel"),
            vmem_limit_bytes=32 * 1024 * 1024),
        cost_estimate=cost,
    )(z_vec)


# ------------------------------------------------------------------
# Full RMILoss.forward (sigmoid variant) — glue in plain JAX.
# ------------------------------------------------------------------
@jax.jit
def rmi_loss(logits_nchw, labels):
    N, C, H, W = logits_nchw.shape
    assert C == NUM_CLASSES
    logits = jnp.transpose(logits_nchw, (0, 2, 3, 1))          # NHWC
    P = N * H * W

    # --- Pallas kernel 1: masked BCE sum, valid count, one-hot, probs ---
    bce_sum, valid_pixels, onehot_flat, probs_flat = bce_onehot_probs(
        logits.reshape(P, C), labels.reshape(P).astype(jnp.int32))
    bce_loss = bce_sum / (valid_pixels + 1.0)
    onehot = onehot_flat.reshape(N, H, W, C)                   # NHWC, masked one-hot
    probs = probs_flat.reshape(N, H, W, C)                     # NHWC

    # --- rmi_lower_bound ---
    p, s, pad = RMI_POOL_SIZE, RMI_POOL_STRIDE, KERNEL_PADDING

    def maxpool(x):  # 3x3, stride 3, pad 1 (NHWC) — pads with -inf like PyTorch
        return lax.reduce_window(
            x, -jnp.inf, lax.max,
            window_dimensions=(1, p, p, 1),
            window_strides=(1, s, s, 1),
            padding=((0, 0), (pad, pad), (pad, pad), (0, 0)))

    la_p = jnp.transpose(maxpool(onehot), (0, 3, 1, 2))        # small NCHW [N,C,Hp,Wp]
    pr_p = jnp.transpose(maxpool(probs), (0, 3, 1, 2))

    Hp, Wp = la_p.shape[2], la_p.shape[3]
    nh, nw = Hp - (RMI_RADIUS - 1), Wp - (RMI_RADIUS - 1)
    M = nh * nw

    # map_get_pairs (is_combine=0): build the shifted stack directly in the
    # [N, C, 2*D, M] layout the kernel consumes (no big 5-D transpose).
    slices = []
    for src in (la_p, pr_p):
        for y in range(RMI_RADIUS):
            for x in range(RMI_RADIUS):
                slices.append(src[:, :, y:y + nh, x:x + nw])
    z_vec = jnp.stack(slices, axis=2).reshape(N, C, FULL_D, M)
    # TODO(synk): PyTorch casts these to float64; TPU Pallas computes in float32.

    # --- Pallas kernel 2: fused covariance gram ---
    gram = centered_gram(z_vec)                                # [N, C, 18, 18]
    la_cov = gram[..., :HALF_D, :HALF_D]
    pr_cov = gram[..., HALF_D:, HALF_D:]
    la_pr_cov = gram[..., :HALF_D, HALF_D:]

    # small 9x9 per-(n,c) linear algebra stays in plain JAX; use a solve
    # instead of an explicit inverse (better conditioned in float32).
    eye = jnp.eye(HALF_D, dtype=jnp.float32)
    sol = jnp.linalg.solve(pr_cov + eye * POS_ALPHA,
                           jnp.swapaxes(la_pr_cov, -2, -1))    # pr_cov_inv @ la_pr^T
    appro_var = la_cov - la_pr_cov @ sol
    chol = jnp.linalg.cholesky(appro_var + eye * POS_ALPHA)
    diag = jnp.diagonal(chol, axis1=-2, axis2=-1)
    log_det = 2.0 * jnp.sum(jnp.log(diag + 1e-8), axis=-1)     # [N, C]
    rmi_now = 0.5 * log_det
    rmi_per_class = jnp.mean(rmi_now.reshape(-1, NUM_CLASSES), axis=0) / float(HALF_D)
    rmi = jnp.sum(rmi_per_class)                               # _IS_SUM = 1

    if LAMBDA_WAY:
        final = LOSS_WEIGHT_LAMBDA * bce_loss + rmi * (1.0 - LOSS_WEIGHT_LAMBDA)
    else:
        final = bce_loss + rmi * LOSS_WEIGHT_LAMBDA
    return final


if __name__ == "__main__":
    key = jax.random.PRNGKey(0)
    k1, k2 = jax.random.split(key)
    N, C, H, W = 2, NUM_CLASSES, 16, 16
    logits = jax.random.normal(k1, (N, C, H, W), dtype=jnp.float32)
    # labels in [0, num_classes+1] plus some ignore_index=255 pixels
    labels = jax.random.randint(k2, (N, H, W), 0, NUM_CLASSES + 2).astype(jnp.int32)
    labels = labels.at[0, 0, :4].set(255)

    loss = rmi_loss(logits, labels)
    jax.block_until_ready(loss)
    assert loss.shape == () and bool(jnp.isfinite(loss))
    print("KERNEL_OK")
</pallas_src>

<mosaic_0001>
module attributes {stable_mosaic.version = 11 : i64} {
  func.func @_bce_probs_kernel(%arg0: i32, %arg1: memref<16x128xf32, #tpu.memory_space<vmem>>, %arg2: memref<16x128xi32, #tpu.memory_space<vmem>>, %arg3: memref<1x8x128xf32, #tpu.memory_space<vmem>>, %arg4: memref<1x8x128xf32, #tpu.memory_space<vmem>>, %arg5: memref<16x128xf32, #tpu.memory_space<vmem>>, %arg6: memref<16x128xf32, #tpu.memory_space<vmem>>) attributes {dimension_semantics = [#tpu.dimension_semantics<parallel>], iteration_bounds = array<i64: 1>, scalar_prefetch = 0 : i64, scratch_operands = 0 : i64, tpu.core_type = #tpu.core_type<tc>, window_params = [{transform_indices = @transform_0, window_bounds = array<i64: 16, 128>}, {transform_indices = @transform_1, window_bounds = array<i64: 16, 128>}, {transform_indices = @transform_2, window_bounds = array<i64: 1, 8, 128>}, {transform_indices = @transform_3, window_bounds = array<i64: 1, 8, 128>}, {transform_indices = @transform_4, window_bounds = array<i64: 16, 128>}, {transform_indices = @transform_5, window_bounds = array<i64: 16, 128>}]} {
    %c0 = arith.constant 0 : index
    %c0_0 = arith.constant 0 : index
    %0 = vector.load %arg1[%c0, %c0_0] : memref<16x128xf32, #tpu.memory_space<vmem>>, vector<16x128xf32>
    %c0_1 = arith.constant 0 : index
    %c0_2 = arith.constant 0 : index
    %1 = vector.load %arg2[%c0_1, %c0_2] : memref<16x128xi32, #tpu.memory_space<vmem>>, vector<16x128xi32>
    %2 = tpu.iota {dimensions = array<i32: 1>} : vector<16x128xi32>
    %c4_i32 = arith.constant 4 : i32
    %c0_i32 = arith.constant 0 : i32
    %3 = arith.cmpi eq, %c4_i32, %c0_i32 : i32
    %c1_i32 = arith.constant 1 : i32
    %4 = arith.select %3, %c1_i32, %c4_i32 : i32
    %5 = vector.broadcast %4 : i32 to vector<16x128xi32>
    %6 = arith.remsi %2, %5 : vector<16x128xi32>
    %c0_i32_3 = arith.constant 0 : i32
    %7 = vector.broadcast %c0_i32_3 : i32 to vector<16x128xi32>
    %8 = arith.cmpi ne, %6, %7 : vector<16x128xi32>
    %c0_i32_4 = arith.constant 0 : i32
    %9 = vector.broadcast %c0_i32_4 : i32 to vector<16x128xi32>
    %10 = arith.cmpi slt, %6, %9 : vector<16x128xi32>
    %c0_i32_5 = arith.constant 0 : i32
    %11 = arith.cmpi slt, %4, %c0_i32_5 : i32
    %12 = vector.broadcast %11 : i1 to vector<16x128xi1>
    %13 = vector.broadcast %12 : vector<16x128xi1> to vector<16x128xi1>
    %14 = arith.xori %10, %13 : vector<16x128xi1>
    %15 = arith.andi %14, %8 : vector<16x128xi1>
    %16 = vector.broadcast %4 : i32 to vector<16x128xi32>
    %17 = arith.addi %6, %16 : vector<16x128xi32>
    %18 = arith.select %15, %17, %6 : vector<16x128xi1>, vector<16x128xi32>
    %c4_i32_6 = arith.constant 4 : i32
    %19 = vector.broadcast %c4_i32_6 : i32 to vector<16x128xi32>
    %20 = arith.cmpi slt, %1, %19 : vector<16x128xi32>
    %21 = arith.extui %20 : vector<16x128xi1> to vector<16x128xi32>
    %22 = arith.sitofp %21 : vector<16x128xi32> to vector<16x128xf32>
    %23 = arith.cmpi eq, %1, %18 : vector<16x128xi32>
    %24 = arith.andi %20, %23 : vector<16x128xi1>
    %cst = arith.constant 1.000000e+00 : f32
    %cst_7 = arith.constant 0.000000e+00 : f32
    %25 = vector.broadcast %cst : f32 to vector<16x128xf32>
    %26 = vector.broadcast %cst_7 : f32 to vector<16x128xf32>
    %27 = arith.select %24, %25, %26 : vector<16x128xi1>, vector<16x128xf32>
    %cst_8 = arith.constant 0.000000e+00 : f32
    %28 = vector.broadcast %cst_8 : f32 to vector<16x128xf32>
    %29 = arith.maximumf %0, %28 : vector<16x128xf32>
    %30 = arith.mulf %0, %27 : vector<16x128xf32>
    %31 = arith.subf %29, %30 : vector<16x128xf32>
    %32 = math.absf %0 : vector<16x128xf32>
    %cst_9 = arith.constant 0.000000e+00 : f32
    %33 = vector.broadcast %cst_9 : f32 to vector<16x128xf32>
    %34 = arith.subf %33, %32 : vector<16x128xf32>
    %35 = math.exp %34 : vector<16x128xf32>
    %36 = math.log1p %35 : vector<16x128xf32>
    %37 = arith.addf %31, %36 : vector<16x128xf32>
    %38 = arith.mulf %37, %22 : vector<16x128xf32>
    %39 = vector.shape_cast %38 : vector<16x128xf32> to vector<2x8x128xf32>
    %cst_10 = arith.constant dense<0.000000e+00> : vector<8x128xf32>
    %40 = vector.multi_reduction <add>, %39, %cst_10 [0] : vector<2x8x128xf32> to vector<8x128xf32>
    %41 = vector.shape_cast %40 : vector<8x128xf32> to vector<1x8x128xf32>
    %c0_11 = arith.constant 0 : index
    %c0_12 = arith.constant 0 : index
    %c0_13 = arith.constant 0 : index
    %42 = vector.load %arg3[%c0_11, %c0_12, %c0_13] : memref<1x8x128xf32, #tpu.memory_space<vmem>>, vector<1x8x128xf32>
    tpu.vector_store %arg3[%c0_11, %c0_12, %c0_13], %41 {strides = array<i32>} : memref<1x8x128xf32, #tpu.memory_space<vmem>>, vector<1x8x128xf32>,
    %43 = vector.shape_cast %22 : vector<16x128xf32> to vector<2x8x128xf32>
    %cst_14 = arith.constant dense<0.000000e+00> : vector<8x128xf32>
    %44 = vector.multi_reduction <add>, %43, %cst_14 [0] : vector<2x8x128xf32> to vector<8x128xf32>
    %45 = vector.shape_cast %44 : vector<8x128xf32> to vector<1x8x128xf32>
    %c0_15 = arith.constant 0 : index
    %c0_16 = arith.constant 0 : index
    %c0_17 = arith.constant 0 : index
    %46 = vector.load %arg4[%c0_15, %c0_16, %c0_17] : memref<1x8x128xf32, #tpu.memory_space<vmem>>, vector<1x8x128xf32>
    tpu.vector_store %arg4[%c0_15, %c0_16, %c0_17], %45 {strides = array<i32>} : memref<1x8x128xf32, #tpu.memory_space<vmem>>, vector<1x8x128xf32>,
    %c0_18 = arith.constant 0 : index
    %c0_19 = arith.constant 0 : index
    %47 = vector.load %arg5[%c0_18, %c0_19] : memref<16x128xf32, #tpu.memory_space<vmem>>, vector<16x128xf32>
    tpu.vector_store %arg5[%c0_18, %c0_19], %27 {strides = array<i32>} : memref<16x128xf32, #tpu.memory_space<vmem>>, vector<16x128xf32>,
    %48 = arith.negf %0 : vector<16x128xf32>
    %49 = math.exp %48 : vector<16x128xf32>
    %cst_20 = arith.constant 1.000000e+00 : f32
    %50 = vector.broadcast %cst_20 : f32 to vector<16x128xf32>
    %51 = arith.addf %50, %49 : vector<16x128xf32>
    %52 = arith.divf %50, %51 : vector<16x128xf32>
    %53 = arith.mulf %52, %22 : vector<16x128xf32>
    %cst_21 = arith.constant 9.99999997E-7 : f32
    %54 = vector.broadcast %cst_21 : f32 to vector<16x128xf32>
    %55 = arith.addf %53, %54 : vector<16x128xf32>
    %c0_22 = arith.constant 0 : index
    %c0_23 = arith.constant 0 : index
    %56 = vector.load %arg6[%c0_22, %c0_23] : memref<16x128xf32, #tpu.memory_space<vmem>>, vector<16x128xf32>
    tpu.vector_store %arg6[%c0_22, %c0_23], %55 {strides = array<i32>} : memref<16x128xf32, #tpu.memory_space<vmem>>, vector<16x128xf32>,
    return
  }
  func.func @transform_0(%arg0: i32) -> (i32, i32) {
    %c0_i32 = arith.constant 0 : i32
    %c0_i32_0 = arith.constant 0 : i32
    return %arg0, %c0_i32 : i32, i32
  }
  func.func @transform_1(%arg0: i32) -> (i32, i32) {
    %c0_i32 = arith.constant 0 : i32
    %c0_i32_0 = arith.constant 0 : i32
    return %arg0, %c0_i32 : i32, i32
  }
  func.func @transform_2(%arg0: i32) -> (i32, i32, i32) {
    %c0_i32 = arith.constant 0 : i32
    %c0_i32_0 = arith.constant 0 : i32
    %c0_i32_1 = arith.constant 0 : i32
    return %arg0, %c0_i32, %c0_i32_0 : i32, i32, i32
  }
  func.func @transform_3(%arg0: i32) -> (i32, i32, i32) {
    %c0_i32 = arith.constant 0 : i32
    %c0_i32_0 = arith.constant 0 : i32
    %c0_i32_1 = arith.constant 0 : i32
    return %arg0, %c0_i32, %c0_i32_0 : i32, i32, i32
  }
  func.func @transform_4(%arg0: i32) -> (i32, i32) {
    %c0_i32 = arith.constant 0 : i32
    %c0_i32_0 = arith.constant 0 : i32
    return %arg0, %c0_i32 : i32, i32
  }
  func.func @transform_5(%arg0: i32) -> (i32, i32) {
    %c0_i32 = arith.constant 0 : i32
    %c0_i32_0 = arith.constant 0 : i32
    return %arg0, %c0_i32 : i32, i32
  }
}

module attributes {stable_mosaic.version = 11 : i64} {
  func.func @_gram_kernel(%arg0: i32, %arg1: i32, %arg2: memref<1x1x18x16xf32, #tpu.memory_space<vmem>>, %arg3: memref<1x1x18x18xf32, #tpu.memory_space<vmem>>) attributes {dimension_semantics = [#tpu.dimension_semantics<parallel>, #tpu.dimension_semantics<parallel>], iteration_bounds = array<i64: 2, 4>, scalar_prefetch = 0 : i64, scratch_operands = 0 : i64, tpu.core_type = #tpu.core_type<tc>, window_params = [{transform_indices = @transform_0, window_bounds = array<i64: 1, 1, 18, 16>}, {transform_indices = @transform_1, window_bounds = array<i64: 1, 1, 18, 18>}]} {
    %c0 = arith.constant 0 : index
    %c0_0 = arith.constant 0 : index
    %c0_1 = arith.constant 0 : index
    %c0_2 = arith.constant 0 : index
    %0 = vector.load %arg2[%c0, %c0_0, %c0_1, %c0_2] : memref<1x1x18x16xf32, #tpu.memory_space<vmem>>, vector<1x1x18x16xf32>
    %1 = vector.shape_cast %0 : vector<1x1x18x16xf32> to vector<18x16xf32>
    %cst = arith.constant dense<0.000000e+00> : vector<18xf32>
    %2 = vector.multi_reduction <add>, %1, %cst [1] : vector<18x16xf32> to vector<18xf32>
    %3 = vector.shape_cast %2 : vector<18xf32> to vector<18x1xf32>
    %cst_3 = arith.constant 1.600000e+01 : f32
    %4 = vector.broadcast %cst_3 : f32 to vector<18x1xf32>
    %5 = arith.divf %3, %4 : vector<18x1xf32>
    %6 = vector.broadcast %5 : vector<18x1xf32> to vector<18x16xf32>
    %7 = arith.subf %1, %6 : vector<18x16xf32>
    %cst_4 = arith.constant dense<0.000000e+00> : vector<18x18xf32>
    %8 = tpu.matmul %7, %7, %cst_4 {dimension_numbers = #tpu.dot_dimension_numbers<[1], [1], [0], [0], [0, 0, 1, 0], [], []>} : vector<18x16xf32>, vector<18x16xf32>, vector<18x18xf32> -> vector<18x18xf32>
    %c0_5 = arith.constant 0 : index
    %c0_6 = arith.constant 0 : index
    %c0_7 = arith.constant 0 : index
    %c0_8 = arith.constant 0 : index
    %9 = vector.load %arg3[%c0_5, %c0_6, %c0_7, %c0_8] : memref<1x1x18x18xf32, #tpu.memory_space<vmem>>, vector<1x1x18x18xf32>
    %10 = vector.shape_cast %9 : vector<1x1x18x18xf32> to vector<18x18xf32>
    %11 = vector.shape_cast %8 : vector<18x18xf32> to vector<1x1x18x18xf32>
    tpu.vector_store %arg3[%c0_5, %c0_6, %c0_7, %c0_8], %11 {strides = array<i32>} : memref<1x1x18x18xf32, #tpu.memory_space<vmem>>, vector<1x1x18x18xf32>,
    return
  }
  func.func @transform_0(%arg0: i32, %arg1: i32) -> (i32, i32, i32, i32) {
    %c0_i32 = arith.constant 0 : i32
    %c0_i32_0 = arith.constant 0 : i32
    %c0_i32_1 = arith.constant 0 : i32
    return %arg0, %arg1, %c0_i32, %c0_i32_0 : i32, i32, i32, i32
  }
  func.func @transform_1(%arg0: i32, %arg1: i32) -> (i32, i32, i32, i32) {
    %c0_i32 = arith.constant 0 : i32
    %c0_i32_0 = arith.constant 0 : i32
    %c0_i32_1 = arith.constant 0 : i32
    return %arg0, %arg1, %c0_i32, %c0_i32_0 : i32, i32, i32, i32
  }
}

</mosaic_0001>

<llo_original>
// kernel: rmi_loss.2
$region0: #{rmi_loss.2}
  #allocation0 [shape = 'u32[]', space=smem, size = 0x4, offset = 0x4, fixed_abs, tag = 'smem constant byte address 0x4 - core index']
  #allocation1 [shape = 'u32[144,128]{1,0:T(1,128)}', space=vmem, size = 0x12000, scoped, tag = 'internal scratch']
  %s0 = inlined_call_operand.vmem [shape: f32[16,128], index: 0, kind: input, shape index: {}]
  %s1 = inlined_call_operand.vmem [shape: s32[16,128], index: 1, kind: input, shape index: {}]
  %s2 = inlined_call_operand.vmem [shape: f32[1,8,128], index: 2, kind: output, shape index: {0}]
  %s3 = inlined_call_operand.vmem [shape: f32[1,8,128], index: 3, kind: output, shape index: {1}]
  %s4 = inlined_call_operand.vmem [shape: f32[16,128], index: 4, kind: output, shape index: {2}]
  %s5 = inlined_call_operand.vmem [shape: f32[16,128], index: 5, kind: output, shape index: {3}]
  %6 = xla_tuple %s2, %s3, %s4, %s5
  %s7 = sld [smem:[#allocation0]]
  $region42: #{rmi_loss.2} parent=0
    _
  %s9 = ssub.s32 1, %s7
  %s10 = scalar_select 0, %s9, %s7
  // Predicated region
  $region2: #{rmi_loss.2} parent=0 // pred_check
    _
  $region3: #{rmi_loss.2} parent=0 // pred_check_branch
    %12 = sbr.rel (0) target = $region5
  $region4: #{rmi_loss.2} parent=0 // pred_region
    _
  $region5: #{rmi_loss.2} parent=0 // pred_fallthru
    _
  // Predicated region
  $region6: #{rmi_loss.2} parent=0 // pred_check
    _
  $region7: #{rmi_loss.2} parent=0 // pred_check_branch
    %14 = sbr.rel (0) target = $region9
  $region8: #{rmi_loss.2} parent=0 // pred_region
    _
  $region9: #{rmi_loss.2} parent=0 // pred_fallthru
    _
  %v15 = vld [vmem:[%s0] sm:$0xff]
  %v16 = vld [vmem:[%s0 + $0x8] sm:$0xff]
  %v17 = vld [vmem:[%s1] sm:$0xff]
  %v18 = vld [vmem:[%s1 + $0x8] sm:$0xff]
  %v19 = vlaneseq
  %v20 = vand.u32 %v19, 127
  %vm21 = vcmp.lt.s32.totalorder %v20, 0
  %v22 = vsub.s32 0, %v20
  %v23 = vsel %vm21, %v22, %v20
  %v24 = vshrl.u32 %v23, 2
  %v25 = vand.u32 %v23, 3
  %v26 = vsub.s32 0, %v25
  %v27 = vsel %vm21, %v26, %v25
  %vm28 = vcmp.ne.s32.totalorder %v27, 0
  %vm29 = vcmp.lt.s32.totalorder %v27, 0
  %vm30 = vmand %vm29, %vm28
  %v31 = vadd.s32 %v27, 4
  %v32 = vsel %vm30, %v31, %v27
  %vm33 = vcmp.lt.s32.totalorder %v17, 4
  %vm34 = vcmp.lt.s32.totalorder %v18, 4
  %v35 = vsel %vm33, 1, 0
  %v36 = vsel %vm34, 1, 0
  %v37 = vcvt.s32.f32 %v35
  %v38 = vcvt.s32.f32 %v36
  %vm39 = vcmp.eq.s32.totalorder %v17, %v32
  %vm40 = vcmp.eq.s32.totalorder %v18, %v32
  %vm41 = vmand %vm33, %vm39
  %vm42 = vmand %vm34, %vm40
  %v43 = vsel %vm41, 1.0, 0.0
  %v44 = vsel %vm42, 1.0, 0.0
  %v45 = vmax.f32 %v15, 0.0
  %v46 = vmax.f32 %v16, 0.0
  %v47 = vmul.f32 %v15, %v43
  %v48 = vmul.f32 %v16, %v44
  %v49 = vsub.f32 %v45, %v47
  %v50 = vsub.f32 %v46, %v48
  %v51 = vand.u32 2147483647, %v15
  %v52 = vand.u32 2147483647, %v16
  %v53 = vsub.f32 0.0, %v51
  %v54 = vsub.f32 0.0, %v52
  %v55 = vmul.f32 %v53, 1.442695
  %v56 = vpow.pop %v55
  %v57 = vmul.f32 %v54, 1.442695
  %v58 = vpow.pop %v57
  %v59 = vadd.f32 %v56, 1.0
  %v60 = vlog2.pop %v59
  %v61 = vmul.f32 %v60, 0.6931472
  %v62 = vmul.f32 -0.5, %v56
  %v63 = vadd.f32 %v62, 1.0
  %v64 = vmul.f32 %v63, %v56
  %v65 = vand.u32 2147483647, %v56
  %vm66 = vcmp.lt.f32.partialorder %v65, 0.0004427343
  %v67 = vsel %vm66, %v64, %v61
  %v68 = vadd.f32 %v58, 1.0
  %v69 = vlog2.pop %v68
  %v70 = vmul.f32 %v69, 0.6931472
  %v71 = vmul.f32 -0.5, %v58
  %v72 = vadd.f32 %v71, 1.0
  %v73 = vmul.f32 %v72, %v58
  %v74 = vand.u32 2147483647, %v58
  %vm75 = vcmp.lt.f32.partialorder %v74, 0.0004427343
  %v76 = vsel %vm75, %v73, %v70
  %v77 = vadd.f32 %v49, %v67
  %v78 = vadd.f32 %v50, %v76
  %v79 = vmul.f32 %v77, %v37
  %v80 = vmul.f32 %v78, %v38
  %v81 = vadd.f32 %v79, %v80
  %82 = vst [vmem:[%s2] sm:$0xff] %v81
  %v83 = vadd.f32 %v37, %v38
  %84 = vst [vmem:[%s3] sm:$0xff] %v83
  %85 = vst [vmem:[%s4] sm:$0xff] %v43
  %86 = vst [vmem:[%s4 + $0x8] sm:$0xff] %v44
  %v87 = vxor.u32 %v15, 2147483648
  %v88 = vxor.u32 %v16, 2147483648
  %v89 = vmul.f32 %v87, 1.442695
  %v90 = vpow.pop %v89
  %v91 = vmul.f32 %v88, 1.442695
  %v92 = vpow.pop %v91
  %v93 = vadd.f32 %v90, 1.0
  %v94 = vadd.f32 %v92, 1.0
  %v95 = vrcp.pop %v93
  %v96 = vmul.f32 1.0, %v95
  %v97 = vrcp.pop %v94
  %v98 = vmul.f32 1.0, %v97
  %v99 = vmul.f32 %v96, %v37
  %v100 = vmul.f32 %v98, %v38
  %v101 = vadd.f32 %v99, 1e-06
  %v102 = vadd.f32 %v100, 1e-06
  %103 = vst [vmem:[%s5] sm:$0xff] %v101
  %104 = vst [vmem:[%s5 + $0x8] sm:$0xff] %v102
  // Predicated region
  $region10: #{rmi_loss.2} parent=0 // pred_check
    _
  $region11: #{rmi_loss.2} parent=0 // pred_check_branch
    %106 = sbr.rel (0) target = $region13
  $region12: #{rmi_loss.2} parent=0 // pred_region
    _
  $region13: #{rmi_loss.2} parent=0 // pred_fallthru
    _
  // Predicated region
  $region14: #{rmi_loss.2} parent=0 // pred_check
    _
  $region15: #{rmi_loss.2} parent=0 // pred_check_branch
    %108 = sbr.rel (0) target = $region17
  $region16: #{rmi_loss.2} parent=0 // pred_region
    _
  $region17: #{rmi_loss.2} parent=0 // pred_fallthru
    _
  // Predicated region
  $region18: #{rmi_loss.2} parent=0 // pred_check
    _
  $region19: #{rmi_loss.2} parent=0 // pred_check_branch
    %110 = sbr.rel (0) target = $region21
  $region20: #{rmi_loss.2} parent=0 // pred_region
    _
  $region21: #{rmi_loss.2} parent=0 // pred_fallthru
    _
  // Predicated region
  $region22: #{rmi_loss.2} parent=0 // pred_check
    _
  $region23: #{rmi_loss.2} parent=0 // pred_check_branch
    %112 = sbr.rel (0) target = $region25
  $region24: #{rmi_loss.2} parent=0 // pred_region
    _
  $region25: #{rmi_loss.2} parent=0 // pred_fallthru
    _
  // Predicated region
  $region26: #{rmi_loss.2} parent=0 // pred_check
    _
  $region27: #{rmi_loss.2} parent=0 // pred_check_branch
    %114 = sbr.rel (0) target = $region29
  $region28: #{rmi_loss.2} parent=0 // pred_region
    _
  $region29: #{rmi_loss.2} parent=0 // pred_fallthru
    _
  // Predicated region
  $region30: #{rmi_loss.2} parent=0 // pred_check
    _
  $region31: #{rmi_loss.2} parent=0 // pred_check_branch
    %116 = sbr.rel (0) target = $region33
  $region32: #{rmi_loss.2} parent=0 // pred_region
    _
  $region33: #{rmi_loss.2} parent=0 // pred_fallthru
    _
  // Predicated region
  $region34: #{rmi_loss.2} parent=0 // pred_check
    _
  $region35: #{rmi_loss.2} parent=0 // pred_check_branch
    %118 = sbr.rel (0) target = $region37
  $region36: #{rmi_loss.2} parent=0 // pred_region
    _
  $region37: #{rmi_loss.2} parent=0 // pred_fallthru
    _
  // Predicated region
  $region38: #{rmi_loss.2} parent=0 // pred_check
    _
  $region39: #{rmi_loss.2} parent=0 // pred_check_branch
    %120 = sbr.rel (0) target = $region41
  $region40: #{rmi_loss.2} parent=0 // pred_region
    _
  $region41: #{rmi_loss.2} parent=0 // pred_fallthru
    _

// kernel: rmi_loss.3
$region0: #{rmi_loss.3}
  #allocation0 [shape = 'u32[]', space=smem, size = 0x4, offset = 0x4, fixed_abs, tag = 'smem constant byte address 0x4 - core index']
  #allocation1 [shape = 'u32[144,128]{1,0:T(1,128)}', space=vmem, size = 0x12000, scoped, tag = 'internal scratch']
  %s0 = inlined_call_operand.vmem [shape: f32[2,4,18,16], index: 0, kind: input, shape index: {}]
  %s1 = inlined_call_operand.vmem [shape: f32[2,4,18,18], index: 1, kind: output, shape index: {}]
  %s2 = sld [smem:[#allocation0]]
  $region37: #{rmi_loss.3} parent=0
    _
  %s4 = ssub.s32 1, %s2
  %s5 = scalar_select 0, %s4, %s2
  loop: start=0, step=1, limit=10
  $region2: #{rmi_loss.3} parent=0 // loop_pre_header
    _
  $region3: #{rmi_loss.3} parent=0 // loop_header
    %s7 = sphi 0, %s11
    %p8 = scmp.ge.s32.totalorder %s7, 10
    %s14 = sphi 0, %s26
    %s15 = sphi 0, %s22
    %s16 = sphi 0, %s14
    %s17 = sphi 0, %s15
    %s18 = sphi 0, %s16
    %s19 = sphi 0, %s17
    %s31 = sphi 0, %s33
    %s34 = sphi 0, %s31
    %s35 = sphi 0, %s34
    %s51 = sphi 0, %s35
    %s59 = sphi 0, %s61
    %s62 = sphi 0, %s59
    %s63 = sphi 0, %s62
    %s79 = sphi 0, %s63
  $region4: #{rmi_loss.3} parent=0 // loop_header_branch
    %10 = sbr.rel (%p8) target = $region8
  $region5: #{rmi_loss.3} parent=0 // loop_body
    %s12 = ssub.s32 %s7, 1
    %s13 = ssub.s32 %s7, 2
    %s20 = sadd.s32 1, %s15
    %p21 = scmp.ge.s32.totalorder %s20, 4
    %s22 = scalar_select %p21, 0, %s20
    %s23 = sadd.s32 1, %s14
    %s24 = scalar_select %p21, %s23, %s14
    %p25 = scmp.ge.s32.totalorder %s24, 2
    %s26 = scalar_select %p25, 0, %s24
    %s27 = ssub.s32 %s14, %s26
    %s28 = ssub.s32 %s15, %s22
    %s29 = sor.u32 %s27, %s28
    %p30 = scmp.eq.s32.totalorder %s29, 0
    %s32 = sadd.s32 %s31, 1
    %s33 = scalar_select %p30, %s31, %s32
    %p36 = pneg %p30
    %p37 = scmp.eq.s32.totalorder %s7, 7
    %p38 = por %p36, %p37
    %p39 = scmp.ne.s32.totalorder %s31, %s34
    %p40 = scmp.eq.s32.totalorder %s7, 0
    %p41 = por %p39, %p40
    %p42 = scmp.ne.s32.totalorder %s31, %s34
    %p43 = scmp.eq.s32.totalorder %s12, 7
    %p44 = por %p42, %p43
    %p45 = scmp.ne.s32.totalorder %s34, %s35
    %p46 = scmp.eq.s32.totalorder %s12, 0
    %p47 = por %p45, %p46
    %p48 = scmp.ne.s32.totalorder %s34, %s35
    %p49 = scmp.eq.s32.totalorder %s13, 7
    %p50 = por %p48, %p49
    %p52 = scmp.ne.s32.totalorder %s35, %s51
    %p53 = scmp.eq.s32.totalorder %s13, 0
    %p54 = por %p52, %p53
    %s55 = ssub.s32 %s14, %s26
    %s56 = ssub.s32 %s15, %s22
    %s57 = sor.u32 %s55, %s56
    %p58 = scmp.eq.s32.totalorder %s57, 0
    %s60 = sadd.s32 %s59, 1
    %s61 = scalar_select %p58, %s59, %s60
    %p64 = pneg %p58
    %p65 = scmp.eq.s32.totalorder %s7, 7
    %p66 = por %p64, %p65
    %p67 = scmp.ne.s32.totalorder %s59, %s62
    %p68 = scmp.eq.s32.totalorder %s7, 0
    %p69 = por %p67, %p68
    %p70 = scmp.ne.s32.totalorder %s59, %s62
    %p71 = scmp.eq.s32.totalorder %s12, 7
    %p72 = por %p70, %p71
    %p73 = scmp.ne.s32.totalorder %s62, %s63
    %p74 = scmp.eq.s32.totalorder %s12, 0
    %p75 = por %p73, %p74
    %p76 = scmp.ne.s32.totalorder %s62, %s63
    %p77 = scmp.eq.s32.totalorder %s13, 7
    %p78 = por %p76, %p77
    %p80 = scmp.ne.s32.totalorder %s63, %s79
    %p81 = scmp.eq.s32.totalorder %s13, 0
    %p82 = por %p80, %p81
    %p83 = scmp.le.s32.totalorder 1, %s7
    %p84 = scmp.lt.s32.totalorder %s7, 9
    %p85 = pnand %p83, %p84
    %p86 = pneg %p85
    // Predicated region
    $region9: #{rmi_loss.3} parent=5 // pred_check
      _
    $region10: #{rmi_loss.3} parent=5 // pred_check_branch
      %88 = sbr.rel (%p85) target = $region12
    $region11: #{rmi_loss.3} parent=5 // pred_region
      %s89 = ssub.s32 %s7, 1
    $region12: #{rmi_loss.3} parent=5 // pred_fallthru
      _
    %p90 = scmp.lt.s32.totalorder %s7, 8
    // Predicated region
    $region13: #{rmi_loss.3} parent=5 // pred_check
      %p91 = pneg %p90
    $region14: #{rmi_loss.3} parent=5 // pred_check_branch
      %93 = sbr.rel (%p91) target = $region16
    $region15: #{rmi_loss.3} parent=5 // pred_region
      // Predicated region
      $region17: #{rmi_loss.3} parent=15 // pred_check
        %p94 = pneg %p41
      $region18: #{rmi_loss.3} parent=15 // pred_check_branch
        %96 = sbr.rel (%p94) target = $region20
      $region19: #{rmi_loss.3} parent=15 // pred_region
        %p97 = scmp.lt.s32.totalorder %s14, 1
        %s98 = scalar_select %p97, %s14, 1
        %p99 = scmp.lt.s32.totalorder %s15, 3
        %s100 = scalar_select %p99, %s15, 3
        %s101 = smul.addr %s100, 3
        %s102 = smul.addr %s98, 12
        %s103 = sadd.s32 %s101, %s102
        %s104 = smul.addr %s103, 8
        %s105 = scalar_lea.vmem %s0, %s104
      $region20: #{rmi_loss.3} parent=15 // pred_fallthru
        _
    $region16: #{rmi_loss.3} parent=5 // pred_fallthru
      _
    %p106 = scmp.le.s32.totalorder 1, %s7
    %p107 = scmp.lt.s32.totalorder %s7, 9
    %p108 = pnand %p106, %p107
    %p109 = pneg %p108
    // Predicated region
    $region21: #{rmi_loss.3} parent=5 // pred_check
      _
    $region22: #{rmi_loss.3} parent=5 // pred_check_branch
      %111 = sbr.rel (%p108) target = $region24
    $region23: #{rmi_loss.3} parent=5 // pred_region
      %s112 = ssub.s32 %s7, 1
      %p113 = scmp.lt.s32.totalorder %s16, 1
      %s114 = scalar_select %p113, %s16, 1
      %p115 = scmp.lt.s32.totalorder %s17, 3
      %s116 = scalar_select %p115, %s17, 3
      %s117 = smul.addr %s116, 3
      %s118 = smul.addr %s114, 12
      %s119 = sadd.s32 %s117, %s118
      %s120 = smul.addr %s119, 8
      %s121 = scalar_lea.vmem %s0, %s120
      %p122 = pneg %p47
      %p123 = pneg %p44
      %p124 = pneg %p75
      %p125 = pneg %p72
      %p126 = scmp.lt.s32.totalorder %s16, 1
      %s127 = scalar_select %p126, %s16, 1
      %p128 = scmp.lt.s32.totalorder %s17, 3
      %s129 = scalar_select %p128, %s17, 3
      %s130 = smul.addr %s129, 3
      %s131 = smul.addr %s127, 12
      %s132 = sadd.s32 %s130, %s131
      %s133 = smul.addr %s132, 8
      %s134 = scalar_lea.vmem %s1, %s133
      %p135 = scmp.lt.s32.totalorder %s16, 1
      %s136 = scalar_select %p135, %s16, 1
      %p137 = scmp.lt.s32.totalorder %s17, 3
      %s138 = scalar_select %p137, %s17, 3
      %s139 = smul.addr %s138, 3
      %s140 = smul.addr %s136, 12
      %s141 = sadd.s32 %s139, %s140
      %s142 = smul.addr %s141, 8
      %s143 = scalar_lea.vmem %s0, %s142
      %p144 = scmp.lt.s32.totalorder %s16, 1
      %s145 = scalar_select %p144, %s16, 1
      %p146 = scmp.lt.s32.totalorder %s17, 3
      %s147 = scalar_select %p146, %s17, 3
      %s148 = smul.addr %s147, 3
      %s149 = smul.addr %s145, 12
      %s150 = sadd.s32 %s148, %s149
      %s151 = smul.addr %s150, 8
      %s152 = scalar_lea.vmem %s1, %s151
      %v153 = vld [vmem:[%s143] sm:$0xff]
      %v154 = vld [vmem:[%s143 + $0x8] sm:$0xff]
      %v155 = vld [vmem:[%s143 + $0x10] sm:$0x3]
      %vm156 = vcmask 130048
      %v157 = vsel %vm156, %v153, 0.0
      %158 = vadd.xlane.f32.xlu0 %v157
      %v159 = vpop.xlane.xlu0 %158
      %v160 = vsel %vm156, %v154, 0.0
      %161 = vadd.xlane.f32.xlu0 %v160
      %v162 = vpop.xlane.xlu0 %161
      %vm163 = vcmask 123904
      %v164 = vsel %vm163, %v155, 0.0
      %165 = vadd.xlane.f32.xlu0 %v164
      %v166 = vpop.xlane.xlu0 %165
      %v167 = vrcp.pop 16.0
      %v168 = vmul.f32 %v159, %v167
      %v169 = vmul.f32 %v162, %v167
      %v170 = vmul.f32 %v166, %v167
      %v171 = vsub.f32 %v153, %v168
      %v172 = vsub.f32 %v154, %v169
      %v173 = vsub.f32 %v155, %v170
      %v175 = vsel %vm156, %v171, 0
      %v178 = vsel %vm156, %v172, 0
      %v181 = vsel %vm156, %v173, 0
      %183 = vmatprep.subr.mxu0 0.0
      %184 = vmatpush1.xpose.msra.mxu0 %v175
      %185 = vmatprep.subr.mxu0 0.0
      %186 = vmatpush1.xpose.msra.mxu0 %v178
      %187 = vmatprep.subr.mxu0 0.0
      %188 = vmatpush1.xpose.msra.mxu0 %v181
      %189 = vmatprep.subr.mxu0 0.0
      %190 = vmatpush1.xpose.msra.mxu0 0.0
      %191 = vmatprep.subr.mxu0 0.0
      %192 = vmatpush1.xpose.msra.mxu0 0.0
      %193 = vmatprep.subr.mxu0 0.0
      %194 = vmatpush1.xpose.msra.mxu0 0.0
      %195 = vmatprep.subr.mxu0 0.0
      %196 = vmatpush1.xpose.msra.mxu0 0.0
      %197 = vmatprep.subr.mxu0 0.0
      %198 = vmatpush1.xpose.msra.mxu0 0.0
      %199 = vmatprep.subr.mxu0 0.0
      %200 = vmatpush1.xpose.msra.mxu0 0.0
      %201 = vmatprep.subr.mxu0 0.0
      %202 = vmatpush1.xpose.msra.mxu0 0.0
      %203 = vmatprep.subr.mxu0 0.0
      %204 = vmatpush1.xpose.msra.mxu0 0.0
      %205 = vmatprep.subr.mxu0 0.0
      %206 = vmatpush1.xpose.msra.mxu0 0.0
      %207 = vmatprep.subr.mxu0 0.0
      %208 = vmatpush1.xpose.msra.mxu0 0.0
      %209 = vmatprep.subr.mxu0 0.0
      %210 = vmatpush1.xpose.msra.mxu0 0.0
      %211 = vmatprep.subr.mxu0 0.0
      %212 = vmatpush1.xpose.msra.mxu0 0.0
      %213 = vmatprep.subr.mxu0 0.0
      %214 = vmatpush1.xpose.msra.mxu0 0.0
      %215 = vmatprep.subr.mxu0 0.0
      %216 = vmatpush1.xpose.msra.mxu0 0.0
      %217 = vmatprep.subr.mxu0 0.0
      %218 = vmatpush1.xpose.msra.mxu0 0.0
      %219 = vmatprep.subr.mxu0 0.0
      %220 = vmatpush1.xpose.msra.mxu0 0.0
      %221 = vmatprep.subr.mxu0 0.0
      %222 = vmatpush1.xpose.msra.mxu0 0.0
      %223 = vmatprep.subr.mxu0 0.0
      %224 = vmatpush1.xpose.msra.mxu0 0.0
      %225 = vmatprep.subr.mxu0 0.0
      %226 = vmatpush1.xpose.msra.mxu0 0.0
      %227 = vmatprep.subr.mxu0 0.0
      %228 = vmatpush1.xpose.msra.mxu0 0.0
      %229 = vmatprep.subr.mxu0 0.0
      %230 = vmatpush1.xpose.msra.mxu0 0.0
      %231 = vmatprep.subr.mxu0 0.0
      %232 = vmatpush1.xpose.msra.mxu0 0.0
      %233 = vmatprep.subr.mxu0 0.0
      %234 = vmatpush1.xpose.msra.mxu0 0.0
      %235 = vmatprep.subr.mxu0 0.0
      %236 = vmatpush1.xpose.msra.mxu0 0.0
      %237 = vmatprep.subr.mxu0 0.0
      %238 = vmatpush1.xpose.msra.mxu0 0.0
      %239 = vmatprep.subr.mxu0 0.0
      %240 = vmatpush1.xpose.msra.mxu0 0.0
      %241 = vmatprep.subr.mxu0 0.0
      %242 = vmatpush1.xpose.msra.mxu0 0.0
      %243 = vmatprep.subr.mxu0 0.0
      %244 = vmatpush1.xpose.msra.mxu0 0.0
      %245 = vmatprep.subr.mxu0 0.0
      %246 = vmatpush1.xpose.msra.mxu0 0.0
      %247 = vmatprep.mubr.f32.mxu0 0.0
      %248 = vmatmul.mubr.f32.gmra.mrb[0].mxu0 %v175
      %v249 = vpop.f32.mrb[0].mxu0
      %v250 = vadd.f32 0.0, %v249
      %v251 = vpop.f32.mrb[0].mxu0
      %252 = vmatprep.mubr.f32.mxu0 0.0
      %253 = vmatmul.mubr.f32.gmra.mrb[0].mxu0 %v178
      %v254 = vpop.f32.mrb[0].mxu0
      %v255 = vadd.f32 0.0, %v254
      %v256 = vpop.f32.mrb[0].mxu0
      %257 = vmatprep.mubr.f32.mxu0 0.0
      %258 = vmatmul.mubr.f32.gmra.mrb[0].mxu0 %v181
      %v259 = vpop.f32.mrb[0].mxu0
      %v260 = vadd.f32 0.0, %v259
      %v261 = vpop.f32.mrb[0].mxu0
      %262 = vdwg.mxu0
      %vm263 = vcmask 146432
      %264 = vst.msk [vmem:[%s152] sm:$0xff] %vm263, %v250
      %265 = vst.msk [vmem:[%s152 + $0x8] sm:$0xff] %vm263, %v255
      %vm266 = vcmask 140288
      %267 = vst.msk [vmem:[%s152 + $0x10] sm:$0x3] %vm266, %v260
      %p268 = scmp.lt.s32.totalorder %s16, 1
      %s269 = scalar_select %p268, %s16, 1
      %p270 = scmp.lt.s32.totalorder %s17, 3
      %s271 = scalar_select %p270, %s17, 3
      %s272 = smul.addr %s271, 3
      %s273 = smul.addr %s269, 12
      %s274 = sadd.s32 %s272, %s273
      %s275 = smul.addr %s274, 8
      %s276 = scalar_lea.vmem %s1, %s275
      // Predicated region
      $region25: #{rmi_loss.3} parent=23 // pred_check
        %p277 = pneg %p72
      $region26: #{rmi_loss.3} parent=23 // pred_check_branch
        %279 = sbr.rel (%p277) target = $region28
      $region27: #{rmi_loss.3} parent=23 // pred_region
        _
      $region28: #{rmi_loss.3} parent=23 // pred_fallthru
        _
    $region24: #{rmi_loss.3} parent=5 // pred_fallthru
      _
    %p280 = scmp.le.s32.totalorder 2, %s7
    // Predicated region
    $region29: #{rmi_loss.3} parent=5 // pred_check
      %p281 = pneg %p280
    $region30: #{rmi_loss.3} parent=5 // pred_check_branch
      %283 = sbr.rel (%p281) target = $region32
    $region31: #{rmi_loss.3} parent=5 // pred_region
      %s284 = ssub.s32 %s7, 2
      // Predicated region
      $region33: #{rmi_loss.3} parent=31 // pred_check
        %p285 = pneg %p78
      $region34: #{rmi_loss.3} parent=31 // pred_check_branch
        %287 = sbr.rel (%p285) target = $region36
      $region35: #{rmi_loss.3} parent=31 // pred_region
        %p288 = scmp.lt.s32.totalorder %s18, 1
        %s289 = scalar_select %p288, %s18, 1
        %p290 = scmp.lt.s32.totalorder %s19, 3
        %s291 = scalar_select %p290, %s19, 3
        %s292 = smul.addr %s291, 3
        %s293 = smul.addr %s289, 12
        %s294 = sadd.s32 %s292, %s293
        %s295 = smul.addr %s294, 8
        %s296 = scalar_lea.vmem %s1, %s295
      $region36: #{rmi_loss.3} parent=31 // pred_fallthru
        _
    $region32: #{rmi_loss.3} parent=5 // pred_fallthru
      _
  $region6: #{rmi_loss.3} parent=0 // loop_footer
    %s11 = sadd.s32 1, %s7
  $region7: #{rmi_loss.3} parent=0 // loop_footer_branch
    %6 = sbr.rel target = $region3
  $region8: #{rmi_loss.3} parent=0 // loop_exit
    _

// kernel: custom-call.10
$region0: #{custom-call.10}
  %s0 = inlined_call_operand.vmem [shape: f32[2,4,9,9], index: 0, kind: input, shape index: {}]
  %s1 = inlined_call_operand.vmem [shape: f32[2,4,9,9], index: 1, kind: output, shape index: {0}]
  %s2 = inlined_call_operand.hbm [shape: s32[2,4,9], index: 2, kind: output, shape index: {1}]
  %s3 = inlined_call_operand.vmem [shape: s32[2,4,9], index: 3, kind: output, shape index: {2}]
  %4 = xla_tuple %s1, %s2, %s3
  $region1: #{custom-call.10} parent=0
    #allocation0 [shape = 'u8[16384]{0}', space=vmem, size = 0x4000, scoped, tag = 'operand span for operand 0']
    #allocation1 [shape = 'u8[16384]{0}', space=vmem, size = 0x4000, scoped, tag = 'operand span for operand 1']
    #allocation2 [shape = 'u8[4096]{0}', space=vmem, size = 0x1000, scoped, tag = 'operand span for operand 2']
    #allocation3 [shape = 'u8[4096]{0}', space=vmem, size = 0x1000, scoped, tag = 'packed  for operand 2']
    #allocation4 [shape = 's32[2]{0}', space=sflag, size = 0x8, scoped, tag = 'scoped memory for custom-call.10']
    #allocation5 [shape = 'u8[4096]{0}', space=vmem, size = 0x1000, scoped, tag = 'operand span for operand 3']
    #allocation6 [shape = 'u8[4096]{0}', space=vmem, size = 0x1000, scoped, tag = 'packed  for operand 3']
    %5 = vsyncpa [#allocation4], 0
    %s6 = scalar_lea.sflag [#allocation4], 1
    %7 = vsyncpa %s6, 0
    loop: start=0, step=1, limit=10
    $region2: #{custom-call.10} parent=1 // loop_pre_header
      _
    $region3: #{custom-call.10} parent=1 // loop_header
      %s9 = sphi 0, %s13
      %p10 = scmp.ge.s32.totalorder %s9, 10
      %s16 = sphi 0, %s28
      %s17 = sphi 0, %s24
      %s18 = sphi 0, %s16
      %s19 = sphi 0, %s17
      %s20 = sphi 0, %s18
      %s21 = sphi 0, %s19
      %s35 = sphi 0, %s37
      %s38 = sphi 0, %s35
      %s39 = sphi 0, %s38
      %s55 = sphi 0, %s39
      %s65 = sphi 0, %s67
      %s68 = sphi 0, %s65
      %s69 = sphi 0, %s68
      %s85 = sphi 0, %s69
    $region4: #{custom-call.10} parent=1 // loop_header_branch
      %12 = sbr.rel (%p10) target = $region8
    $region5: #{custom-call.10} parent=1 // loop_body
      %s14 = ssub.s32 %s9, 1
      %s15 = ssub.s32 %s9, 2
      %s22 = sadd.s32 1, %s17
      %p23 = scmp.ge.s32.totalorder %s22, 4
      %s24 = scalar_select %p23, 0, %s22
      %s25 = sadd.s32 1, %s16
      %s26 = scalar_select %p23, %s25, %s16
      %p27 = scmp.ge.s32.totalorder %s26, 2
      %s28 = scalar_select %p27, 0, %s26
      %s29 = sshrl.u32 %s17, 3
      %s30 = sshrl.u32 %s24, 3
      %s31 = ssub.s32 %s16, %s28
      %s32 = ssub.s32 %s29, %s30
      %s33 = sor.u32 %s31, %s32
      %p34 = scmp.eq.s32.totalorder %s33, 0
      %s36 = sadd.s32 %s35, 1
      %s37 = scalar_select %p34, %s35, %s36
      %p40 = pneg %p34
      %p41 = scmp.eq.s32.totalorder %s9, 7
      %p42 = por %p40, %p41
      %p43 = scmp.ne.s32.totalorder %s35, %s38
      %p44 = scmp.eq.s32.totalorder %s9, 0
      %p45 = por %p43, %p44
      %p46 = scmp.ne.s32.totalorder %s35, %s38
      %p47 = scmp.eq.s32.totalorder %s14, 7
      %p48 = por %p46, %p47
      %p49 = scmp.ne.s32.totalorder %s38, %s39
      %p50 = scmp.eq.s32.totalorder %s14, 0
      %p51 = por %p49, %p50
      %p52 = scmp.ne.s32.totalorder %s38, %s39
      %p53 = scmp.eq.s32.totalorder %s15, 7
      %p54 = por %p52, %p53
      %p56 = scmp.ne.s32.totalorder %s39, %s55
      %p57 = scmp.eq.s32.totalorder %s15, 0
      %p58 = por %p56, %p57
      %s59 = sshrl.u32 %s17, 3
      %s60 = sshrl.u32 %s24, 3
      %s61 = ssub.s32 %s16, %s28
      %s62 = ssub.s32 %s59, %s60
      %s63 = sor.u32 %s61, %s62
      %p64 = scmp.eq.s32.totalorder %s63, 0
      %s66 = sadd.s32 %s65, 1
      %s67 = scalar_select %p64, %s65, %s66
      %p70 = pneg %p64
      %p71 = scmp.eq.s32.totalorder %s9, 7
      %p72 = por %p70, %p71
      %p73 = scmp.ne.s32.totalorder %s65, %s68
      %p74 = scmp.eq.s32.totalorder %s9, 0
      %p75 = por %p73, %p74
      %p76 = scmp.ne.s32.totalorder %s65, %s68
      %p77 = scmp.eq.s32.totalorder %s14, 7
      %p78 = por %p76, %p77
      %p79 = scmp.ne.s32.totalorder %s68, %s69
      %p80 = scmp.eq.s32.totalorder %s14, 0
      %p81 = por %p79, %p80
      %p82 = scmp.ne.s32.totalorder %s68, %s69
      %p83 = scmp.eq.s32.totalorder %s15, 7
      %p84 = por %p82, %p83
      %p86 = scmp.ne.s32.totalorder %s69, %s85
      %p87 = scmp.eq.s32.totalorder %s15, 0
      %p88 = por %p86, %p87
      %p89 = scmp.le.s32.totalorder 1, %s9
      %p90 = scmp.lt.s32.totalorder %s9, 9
      %p91 = pnand %p89, %p90
      %p92 = pneg %p91
      // Predicated region
      $region9: #{custom-call.10} parent=5 // pred_check
        _
      $region10: #{custom-call.10} parent=5 // pred_check_branch
        %94 = sbr.rel (%p91) target = $region12
      $region11: #{custom-call.10} parent=5 // pred_region
        %s95 = ssub.s32 %s9, 1
      $region12: #{custom-call.10} parent=5 // pred_fallthru
        _
      %p96 = scmp.lt.s32.totalorder %s9, 8
      // Predicated region
      $region13: #{custom-call.10} parent=5 // pred_check
        %p97 = pneg %p96
      $region14: #{custom-call.10} parent=5 // pred_check_branch
        %99 = sbr.rel (%p97) target = $region16
      $region15: #{custom-call.10} parent=5 // pred_region
        %s100 = sand.u32 %s9, 1
        %s101 = sand.u32 %s9, 1
        %s102 = smul.addr %s101, 16
        %s103 = scalar_lea.vmem [#allocation0], %s102
        %s104 = smul.addr %s16, 4
        %s105 = sadd.s32 %s17, %s104
        %s106 = smul.addr %s105, 16
        %s107 = scalar_lea.vmem %s0, %s106
        // Predicated region
        $region17: #{custom-call.10} parent=15 // pred_check
          _
        $region18: #{custom-call.10} parent=15 // pred_check_branch
          %109 = sbr.rel (0) target = $region20
        $region19: #{custom-call.10} parent=15 // pred_region
          // Predicated region
          $region21: #{custom-call.10} parent=19 // pred_check
            _
          $region22: #{custom-call.10} parent=19 // pred_check_branch
            %111 = sbr.rel (0) target = $region24
          $region23: #{custom-call.10} parent=19 // pred_region
            loop: start=0, step=1, limit=1
            $region25: #{custom-call.10} parent=23 // loop_pre_header
              _
            $region26: #{custom-call.10} parent=23 // loop_header
              %s113 = sphi 0, %s117
              %p114 = scmp.ge.s32.totalorder %s113, 1
              %s118 = sphi %s107, %s107
              %s119 = sphi %s103, %s103
            $region27: #{custom-call.10} parent=23 // loop_header_branch
              %116 = sbr.rel (%p114) target = $region31
            $region28: #{custom-call.10} parent=23 // loop_body
              %v120 = vld [vmem:[%s118] sm:$0xff]
              %121 = vst [vmem:[%s119] sm:$0xff] %v120
              %v122 = vld [vmem:[%s118 + $0x8] sm:$0xff]
              %123 = vst [vmem:[%s119 + $0x8] sm:$0xff] %v122
            $region29: #{custom-call.10} parent=23 // loop_footer
              %s117 = sadd.s32 1, %s113
            $region30: #{custom-call.10} parent=23 // loop_footer_branch
              %112 = sbr.rel target = $region26
            $region31: #{custom-call.10} parent=23 // loop_exit
              _
          $region24: #{custom-call.10} parent=19 // pred_fallthru
            _
          // Predicated region
          $region32: #{custom-call.10} parent=19 // pred_check
            _
          $region33: #{custom-call.10} parent=19 // pred_check_branch
            %125 = sbr.rel target = $region35
          $region34: #{custom-call.10} parent=19 // pred_region
            _
          $region35: #{custom-call.10} parent=19 // pred_fallthru
            _
        $region20: #{custom-call.10} parent=15 // pred_fallthru
          _
        %126 = vnop
      $region16: #{custom-call.10} parent=5 // pred_fallthru
        _
      %p127 = scmp.le.s32.totalorder 1, %s9
      %p128 = scmp.lt.s32.totalorder %s9, 9
      %p129 = pnand %p127, %p128
      %p130 = pneg %p129
      // Predicated region
      $region36: #{custom-call.10} parent=5 // pred_check
        _
      $region37: #{custom-call.10} parent=5 // pred_check_branch
        %132 = sbr.rel (%p129) target = $region39
      $region38: #{custom-call.10} parent=5 // pred_region
        #allocation7 [shape = 's32[9,128]{1,0}', space=vmem, size = 0x2000, scoped, tag = 'scratch for permutations']
        %s133 = ssub.s32 %s9, 1
        %s134 = sand.u32 %s14, 1
        %s135 = sand.u32 %s14, 1
        %s136 = smul.addr %s135, 16
        %s137 = scalar_lea.vmem [#allocation0], %s136
        %s138 = sand.u32 %s14, 1
        %s139 = sand.u32 %s14, 1
        %s140 = smul.addr %s139, 16
        %s141 = scalar_lea.vmem [#allocation0], %s140
        %s142 = sand.u32 %s14, 1
        %s143 = sand.u32 %s14, 1
        %s144 = smul.addr %s143, 16
        %s145 = scalar_lea.vmem [#allocation1], %s144
        %p146 = pneg %p51
        %p147 = pneg %p48
        %s148 = sand.u32 %s38, 1
        %s149 = scalar_lea.sflag [#allocation4], %s148
        %s150 = sand.u32 %s38, 1
        %s151 = smul.addr %s150, 4
        %s152 = scalar_lea.vmem [#allocation3], %s151
        %p153 = pneg %p81
        %p154 = pneg %p78
        %s155 = sand.u32 %s68, 1
        %s156 = sand.u32 %s68, 1
        %s157 = smul.addr %s156, 4
        %s158 = scalar_lea.vmem [#allocation6], %s157
        %s159 = sshrl.u32 %s19, 3
        %s160 = sshrl.u32 %s19, 3
        %v161 = vld [vmem:[%s137] sm:$0xff]
        %162 = vst [vmem:[%s145] sm:$0xff] %v161
        %s163 = scalar_lea.vmem %s145, 8 [#allocation1]
        %s164 = scalar_lea.vmem %s137, 8 [#allocation0]
        %v165 = vld [vmem:[%s164] sm:$0xff]
        %166 = vst [vmem:[%s163] sm:$0xff] %v165
        %s167 = sand.u32 %s19, 7
        %s168 = scalar_lea.vmem [#allocation2], %s167
        %s169 = sand.u32 %s19, 7
        %s170 = scalar_lea.vmem [#allocation5], %s169
        %171 = vst [vmem:[%s168] sm:$0x1] 0
        %v172 = vlaneseq
        %v173 = vshrl.u32 %v172, 7
        %v174 = vmov %v173
        loop: start=0, step=1, limit=2
        $region40: #{custom-call.10} parent=38 // loop_pre_header
          _
        $region41: #{custom-call.10} parent=38 // loop_header
          %s176 = sphi 0, %s180
          %p177 = scmp.ge.s32.totalorder %s176, 2
        $region42: #{custom-call.10} parent=38 // loop_header_branch
          %179 = sbr.rel (%p177) target = $region46
        $region43: #{custom-call.10} parent=38 // loop_body
          %s181 = smul.addr %s176, 8
          %s182 = scalar_lea.vmem [#allocation7], %s181
          %s183 = smul.u32 %s176, 8
          %v184 = vstv %s183
          %v185 = vadd.s32 %v174, %v184
          %186 = vst [vmem:[%s182] sm:$0xff] %v185
        $region44: #{custom-call.10} parent=38 // loop_footer
          %s180 = sadd.s32 1, %s176
        $region45: #{custom-call.10} parent=38 // loop_footer_branch
          %175 = sbr.rel target = $region41
        $region46: #{custom-call.10} parent=38 // loop_exit
          _
        loop: start=0, step=1, limit=9
        $region47: #{custom-call.10} parent=38 // loop_pre_header
          _
        $region48: #{custom-call.10} parent=38 // loop_header
          %s188 = sphi 0, %s192
          %p189 = scmp.ge.s32.totalorder %s188, 9
        $region49: #{custom-call.10} parent=38 // loop_header_branch
          %191 = sbr.rel (%p189) target = $region53
        $region50: #{custom-call.10} parent=38 // loop_body
          %v193 = vstv %s188
          %v194 = vlaneseq
          %v195 = vshrl.u32 %v194, 7
          %v196 = vmov %v195
          %v197 = vld [vmem:[%s145] sm:$0xff]
          %v198 = vand.u32 2147483647, %v197
          %v200 = vstv %s188
          %vm201 = vcmp.ge.s32.totalorder %v196, %v200
          %vm202 = vcmp.lt.s32.totalorder %v196, 9
          %vm203 = vmand %vm201, %vm202
          %vm204 = vcmp.lt.f32.partialorder -inf, %v198
          %vm205 = vmand %vm203, %vm204
          %v206 = vsel %vm205, %v196, %v193
          %v207 = vsel %vm205, %v198, -inf
          %s208 = scalar_lea.vmem %s145, 8 [#allocation1]
          %v209 = vld [vmem:[%s208] sm:$0xff]
          %v210 = vand.u32 2147483647, %v209
          %v211 = vadd.s32 %v196, 8
          %v212 = vstv %s188
          %vm213 = vcmp.ge.s32.totalorder %v211, %v212
          %vm214 = vcmp.lt.s32.totalorder %v211, 9
          %vm215 = vmand %vm213, %vm214
          %vm216 = vcmp.lt.f32.partialorder %v207, %v210
          %vm217 = vmand %vm215, %vm216
          %v218 = vsel %vm217, %v211, %v206
          %v219 = vsel %vm217, %v210, %v207
          %v220 = vrot.slane %v219, 1
          %v221 = vrot.slane %v218, 1
          %vm222 = vcmp.ge.f32.partialorder %v220, %v219
          %v223 = vsel %vm222, %v220, %v219
          %v224 = vsel %vm222, %v221, %v218
          %v225 = vrot.slane %v220, 1
          %v226 = vrot.slane %v221, 1
          %vm227 = vcmp.ge.f32.partialorder %v225, %v223
          %v228 = vsel %vm227, %v225, %v223
          %v229 = vsel %vm227, %v226, %v224
          %v230 = vrot.slane %v225, 1
          %v231 = vrot.slane %v226, 1
          %vm232 = vcmp.ge.f32.partialorder %v230, %v228
          %v233 = vsel %vm232, %v230, %v228
          %v234 = vsel %vm232, %v231, %v229
          %v235 = vrot.slane %v230, 1
          %v236 = vrot.slane %v231, 1
          %vm237 = vcmp.ge.f32.partialorder %v235, %v233
          %v238 = vsel %vm237, %v235, %v233
          %v239 = vsel %vm237, %v236, %v234
          %v240 = vrot.slane %v235, 1
          %v241 = vrot.slane %v236, 1
          %vm242 = vcmp.ge.f32.partialorder %v240, %v238
          %v243 = vsel %vm242, %v240, %v238
          %v244 = vsel %vm242, %v241, %v239
          %v245 = vrot.slane %v240, 1
          %v246 = vrot.slane %v241, 1
          %vm247 = vcmp.ge.f32.partialorder %v245, %v243
          %v248 = vsel %vm247, %v245, %v243
          %v249 = vsel %vm247, %v246, %v244
          %v250 = vrot.slane %v245, 1
          %v251 = vrot.slane %v246, 1
          %vm252 = vcmp.ge.f32.partialorder %v250, %v248
          %v253 = vsel %vm252, %v250, %v248
          %v254 = vsel %vm252, %v251, %v249
          %s255 = ssub.s32 128, %s188
          %256 = vrot.lane.b32.xlu0 %v254, %s255
          %v257 = vpop.permute.xlu0 %256
          %s258 = vtos %v257
          %v259 = vstv %s188
          %v260 = vlaneseq
          %v261 = vand.u32 %v260, 127
          %vm262 = vcmp.eq.s32.totalorder %v261, %v259
          %v263 = vstv %s258
          %v264 = vld [vmem:[%s168] ss:$0 sm:$0xff]
          %v265 = vsel %vm262, %v263, %v264
          %266 = vst [vmem:[%s168] sm:$0x1] %v265
          %s267 = scalar_lea.vmem %s145, %s188 [#allocation1]
          %s268 = scalar_lea.vmem %s145, %s258 [#allocation1]
          %v269 = vld [vmem:[%s267] ss:$0 sm:$0xff]
          %v270 = vld [vmem:[%s268] ss:$0 sm:$0xff]
          %271 = vst [vmem:[%s268] sm:$0x1] %v269
          %272 = vst [vmem:[%s267] sm:$0x1] %v270
          %s273 = scalar_lea.vmem [#allocation7], %s188
          %s274 = scalar_lea.vmem [#allocation7], %s258
          %v275 = vld [vmem:[%s273] ss:$0 sm:$0xff]
          %v276 = vld [vmem:[%s274] ss:$0 sm:$0xff]
          %277 = vst [vmem:[%s274] sm:$0x1] %v275
          %278 = vst [vmem:[%s273] sm:$0x1] %v276
          %vm279 = vcmp.ne.f32.partialorder %v270, 0.0
          %vm280 = vmand %vm262, %vm279
          %v281 = vsel %vm280, %v270, 1.0
          %v282 = vlaneseq
          %v283 = vand.u32 %v282, 127
          %v284 = vstv %s188
          %vm285 = vcmp.gt.s32.totalorder %v283, %v284
          %v286 = vsel %vm285, %v270, 0.0
          %v287 = vlaneseq
          %v288 = vshrl.u32 %v287, 7
          %v289 = vmov %v288
          %v290 = vld [vmem:[%s145] sm:$0xff]
          %v292 = vstv %s188
          %vm293 = vcmp.gt.s32.totalorder %v289, %v292
          %v294 = vsel %vm293, %v281, 1.0
          %v295 = vrcp.pop %v294
          %v296 = vmul.f32 %v290, %v295
          %vm297 = vmand %vm293, %vm262
          %v298 = vsel %vm297, %v296, 0.0
          %299 = vadd.xlane.f32.xlu0 %v298
          %v300 = vpop.xlane.xlu0 %299
          %v301 = vmul.f32 %v300, %v286
          %v302 = vsub.f32 %v296, %v301
          %303 = vst [vmem:[%s145] sm:$0xff] %v302
          %s304 = scalar_lea.vmem %s145, 8 [#allocation1]
          %v305 = vld [vmem:[%s304] sm:$0xff]
          %v306 = vadd.s32 %v289, 8
          %v307 = vstv %s188
          %vm308 = vcmp.gt.s32.totalorder %v306, %v307
          %v309 = vsel %vm308, %v281, 1.0
          %v310 = vrcp.pop %v309
          %v311 = vmul.f32 %v305, %v310
          %vm312 = vmand %vm308, %vm262
          %v313 = vsel %vm312, %v311, 0.0
          %314 = vadd.xlane.f32.xlu0 %v313
          %v315 = vpop.xlane.xlu0 %314
          %v316 = vmul.f32 %v315, %v286
          %v317 = vsub.f32 %v311, %v316
          %318 = vst [vmem:[%s304] sm:$0xff] %v317
        $region51: #{custom-call.10} parent=38 // loop_footer
          %s192 = sadd.s32 1, %s188
        $region52: #{custom-call.10} parent=38 // loop_footer_branch
          %187 = sbr.rel target = $region48
        $region53: #{custom-call.10} parent=38 // loop_exit
          _
        %v319 = vld [vmem:[#allocation7] sm:$0xff]
        %s320 = scalar_lea.vmem [#allocation7], 8
        %v321 = vld [vmem:[%s320] sm:$0xff]
        %s322 = scalar_lea.vmem [#allocation7], 16
        %s323 = scalar_lea.vmem [#allocation7], 24
        %s324 = scalar_lea.vmem [#allocation7], 32
        %s325 = scalar_lea.vmem [#allocation7], 40
        %s326 = scalar_lea.vmem [#allocation7], 48
        %s327 = scalar_lea.vmem [#allocation7], 56
        %s328 = scalar_lea.vmem [#allocation7], 64
        %s329 = scalar_lea.vmem [#allocation7], 72
        %s330 = scalar_lea.vmem [#allocation7], 80
        %s331 = scalar_lea.vmem [#allocation7], 88
        %s332 = scalar_lea.vmem [#allocation7], 96
        %s333 = scalar_lea.vmem [#allocation7], 104
        %s334 = scalar_lea.vmem [#allocation7], 112
        %s335 = scalar_lea.vmem [#allocation7], 120
        %336 = vxpose.xlu0.b32.start [1/16] %v319, 128
        %337 = vxpose.xlu0.b32.cont [2/16] %v321, 128
        %338 = vxpose.xlu0.b32.cont [3/16] 0, 128
        %339 = vxpose.xlu0.b32.cont [4/16] 0, 128
        %340 = vxpose.xlu0.b32.cont [5/16] 0, 128
        %341 = vxpose.xlu0.b32.cont [6/16] 0, 128
        %342 = vxpose.xlu0.b32.cont [7/16] 0, 128
        %343 = vxpose.xlu0.b32.cont [8/16] 0, 128
        %344 = vxpose.xlu0.b32.cont [9/16] 0, 128
        %345 = vxpose.xlu0.b32.cont [10/16] 0, 128
        %346 = vxpose.xlu0.b32.cont [11/16] 0, 128
        %347 = vxpose.xlu0.b32.cont [12/16] 0, 128
        %348 = vxpose.xlu0.b32.cont [13/16] 0, 128
        %349 = vxpose.xlu0.b32.cont [14/16] 0, 128
        %350 = vxpose.xlu0.b32.cont [15/16] 0, 128
        %351 = vxpose.xlu0.b32.end [16/16] 0, 128
        %v352 = vpop.trf.xlu0
        %v353 = vpop.trf.xlu0
        %v354 = vpop.trf.xlu0
        %v355 = vpop.trf.xlu0
        %v356 = vpop.trf.xlu0
        %v357 = vpop.trf.xlu0
        %v358 = vpop.trf.xlu0
        %v359 = vpop.trf.xlu0
        %v360 = vpop.trf.xlu0
        %v361 = vpop.trf.xlu0
        %v362 = vpop.trf.xlu0
        %v363 = vpop.trf.xlu0
        %v364 = vpop.trf.xlu0
        %v365 = vpop.trf.xlu0
        %v366 = vpop.trf.xlu0
        %v367 = vpop.trf.xlu0
        %368 = vst [vmem:[%s170] sm:$0x1] %v352
        %s370 = sshllo.u32 0, 4
        %v372 = vld [vmem:[#allocation2] sm:%s370]
        %s373 = sshllo.u32 0, 4
        %374 = vst [vmem:[%s152] sm:%s373] %v372
        %s376 = sshllo.u32 0, 4
        %v378 = vld [vmem:[#allocation5] sm:%s376]
        %s379 = sshllo.u32 0, 4
        %380 = vst [vmem:[%s158] sm:%s379] %v378
        %s381 = sand.u32 %s14, 1
        %s382 = sand.u32 %s14, 1
        %s383 = smul.addr %s382, 16
        %s384 = scalar_lea.vmem [#allocation1], %s383
        %s385 = sand.u32 %s38, 1
        %s386 = scalar_lea.sflag [#allocation4], %s385
        %s387 = sand.u32 %s38, 1
        %s388 = smul.addr %s387, 4
        %s389 = scalar_lea.vmem [#allocation3], %s388
        %s390 = sand.u32 %s68, 1
        %s391 = sand.u32 %s68, 1
        %s392 = smul.addr %s391, 4
        %s393 = scalar_lea.vmem [#allocation6], %s392
        %s394 = smul.addr %s18, 4
        %s395 = sadd.s32 %s19, %s394
        %s396 = smul.addr %s395, 16
        %s397 = scalar_lea.vmem %s1, %s396
        // Predicated region
        $region54: #{custom-call.10} parent=38 // pred_check
          _
        $region55: #{custom-call.10} parent=38 // pred_check_branch
          %399 = sbr.rel (0) target = $region57
        $region56: #{custom-call.10} parent=38 // pred_region
          // Predicated region
          $region58: #{custom-call.10} parent=56 // pred_check
            _
          $region59: #{custom-call.10} parent=56 // pred_check_branch
            %401 = sbr.rel (0) target = $region61
          $region60: #{custom-call.10} parent=56 // pred_region
            loop: start=0, step=1, limit=1
            $region62: #{custom-call.10} parent=60 // loop_pre_header
              _
            $region63: #{custom-call.10} parent=60 // loop_header
              %s403 = sphi 0, %s407
              %p404 = scmp.ge.s32.totalorder %s403, 1
              %s408 = sphi %s384, %s384
              %s409 = sphi %s397, %s397
            $region64: #{custom-call.10} parent=60 // loop_header_branch
              %406 = sbr.rel (%p404) target = $region68
            $region65: #{custom-call.10} parent=60 // loop_body
              %v410 = vld [vmem:[%s408] sm:$0xff]
              %411 = vst [vmem:[%s409] sm:$0xff] %v410
              %v412 = vld [vmem:[%s408 + $0x8] sm:$0xff]
              %413 = vst [vmem:[%s409 + $0x8] sm:$0xff] %v412
            $region66: #{custom-call.10} parent=60 // loop_footer
              %s407 = sadd.s32 1, %s403
            $region67: #{custom-call.10} parent=60 // loop_footer_branch
              %402 = sbr.rel target = $region63
            $region68: #{custom-call.10} parent=60 // loop_exit
              _
          $region61: #{custom-call.10} parent=56 // pred_fallthru
            _
          // Predicated region
          $region69: #{custom-call.10} parent=56 // pred_check
            _
          $region70: #{custom-call.10} parent=56 // pred_check_branch
            %415 = sbr.rel target = $region72
          $region71: #{custom-call.10} parent=56 // pred_region
            _
          $region72: #{custom-call.10} parent=56 // pred_fallthru
            _
        $region57: #{custom-call.10} parent=38 // pred_fallthru
          _
        %416 = vnop
        // Predicated region
        $region73: #{custom-call.10} parent=38 // pred_check
          %p417 = pneg %p48
        $region74: #{custom-call.10} parent=38 // pred_check_branch
          %419 = sbr.rel (%p417) target = $region76
        $region75: #{custom-call.10} parent=38 // pred_region
          %s420 = sshrl.u32 %s19, 3
          %s422 = ssub.s32 64, 64
          %423 = vsyncadd %s386, %s422
          %s424 = sadd.s32 %s420, %s18
          %s425 = smul.addr %s424, 64
          %s426 = scalar_lea.hbm %s2, %s425
          %s428 = sshll.u32 %s389, 4
          %s429 = int_to_ptr.vmem [resolvable:$true] %s428
          %431 = dma.vmem_to_hbm [thread:$0]  %s429, 64, %s426, %s386
        $region76: #{custom-call.10} parent=38 // pred_fallthru
          _
        // Predicated region
        $region77: #{custom-call.10} parent=38 // pred_check
          %p432 = pneg %p78
        $region78: #{custom-call.10} parent=38 // pred_check_branch
          %434 = sbr.rel (%p432) target = $region80
        $region79: #{custom-call.10} parent=38 // pred_region
          %s435 = sshrl.u32 %s19, 3
          %s436 = sadd.s32 %s435, %s18
          %s437 = smul.addr %s436, 4
          %s438 = scalar_lea.vmem %s3, %s437
          // Predicated region
          $region81: #{custom-call.10} parent=79 // pred_check
            _
          $region82: #{custom-call.10} parent=79 // pred_check_branch
            %440 = sbr.rel (0) target = $region84
          $region83: #{custom-call.10} parent=79 // pred_region
            // Predicated region
            $region85: #{custom-call.10} parent=83 // pred_check
              _
            $region86: #{custom-call.10} parent=83 // pred_check_branch
              %442 = sbr.rel target = $region88
            $region87: #{custom-call.10} parent=83 // pred_region
              // Predicated region
              $region100: #{custom-call.10} parent=87 // pred_check
                _
              $region101: #{custom-call.10} parent=87 // pred_check_branch
                %457 = sbr.rel (0) target = $region103
              $region102: #{custom-call.10} parent=87 // pred_region
                loop: start=0, step=1, limit=1
                $region104: #{custom-call.10} parent=102 // loop_pre_header
                  _
                $region105: #{custom-call.10} parent=102 // loop_header
                  %s460 = sphi 0, %s464
                  %p461 = scmp.ge.s32.totalorder %s460, 1
                  %s465 = sphi %s393, %s393
                  %s466 = sphi %s438, %s438
                $region106: #{custom-call.10} parent=102 // loop_header_branch
                  %463 = sbr.rel (%p461) target = $region110
                $region107: #{custom-call.10} parent=102 // loop_body
                  %v467 = vld [vmem:[%s465] sm:$0xf]
                  %468 = vst [vmem:[%s466] sm:$0xf] %v467
                $region108: #{custom-call.10} parent=102 // loop_footer
                  %s464 = sadd.s32 1, %s460
                $region109: #{custom-call.10} parent=102 // loop_footer_branch
                  %459 = sbr.rel target = $region105
                $region110: #{custom-call.10} parent=102 // loop_exit
                  _
              $region103: #{custom-call.10} parent=87 // pred_fallthru
                _
            $region88: #{custom-call.10} parent=83 // pred_fallthru
              _
            // Predicated region
            $region89: #{custom-call.10} parent=83 // pred_check
              _
            $region90: #{custom-call.10} parent=83 // pred_check_branch
              %444 = sbr.rel (0) target = $region92
            $region91: #{custom-call.10} parent=83 // pred_region
              loop: start=0, step=1, limit=1
              $region93: #{custom-call.10} parent=91 // loop_pre_header
                _
              $region94: #{custom-call.10} parent=91 // loop_header
                %s447 = sphi 0, %s451
                %p448 = scmp.ge.s32.totalorder %s447, 1
                %s452 = sphi %s393, %s393
                %s453 = sphi %s438, %s438
              $region95: #{custom-call.10} parent=91 // loop_header_branch
                %450 = sbr.rel (%p448) target = $region99
              $region96: #{custom-call.10} parent=91 // loop_body
                %v454 = vld [vmem:[%s452] sm:$0xf]
                %455 = vst [vmem:[%s453] sm:$0xf] %v454
              $region97: #{custom-call.10} parent=91 // loop_footer
                %s451 = sadd.s32 1, %s447
              $region98: #{custom-call.10} parent=91 // loop_footer_branch
                %446 = sbr.rel target = $region94
              $region99: #{custom-call.10} parent=91 // loop_exit
                _
            $region92: #{custom-call.10} parent=83 // pred_fallthru
              _
          $region84: #{custom-call.10} parent=79 // pred_fallthru
            _
          %469 = vnop
        $region80: #{custom-call.10} parent=38 // pred_fallthru
          _
      $region39: #{custom-call.10} parent=5 // pred_fallthru
        _
      %p470 = scmp.le.s32.totalorder 2, %s9
      // Predicated region
      $region111: #{custom-call.10} parent=5 // pred_check
        %p471 = pneg %p470
      $region112: #{custom-call.10} parent=5 // pred_check_branch
        %473 = sbr.rel (%p471) target = $region114
      $region113: #{custom-call.10} parent=5 // pred_region
        %s474 = ssub.s32 %s9, 2
        %s475 = sand.u32 %s15, 1
        %s476 = sand.u32 %s15, 1
        %s477 = smul.addr %s476, 16
        %s478 = scalar_lea.vmem [#allocation1], %s477
        // Predicated region
        $region115: #{custom-call.10} parent=113 // pred_check
          %p479 = pneg %p54
        $region116: #{custom-call.10} parent=113 // pred_check_branch
          %481 = sbr.rel (%p479) target = $region118
        $region117: #{custom-call.10} parent=113 // pred_region
          %s482 = sand.u32 %s39, 1
          %s483 = scalar_lea.sflag [#allocation4], %s482
          %s484 = sand.u32 %s39, 1
          %s485 = smul.addr %s484, 4
          %s486 = scalar_lea.vmem [#allocation3], %s485
          %487 = dma.done %s483, 64
        $region118: #{custom-call.10} parent=113 // pred_fallthru
          _
        // Predicated region
        $region119: #{custom-call.10} parent=113 // pred_check
          %p488 = pneg %p84
        $region120: #{custom-call.10} parent=113 // pred_check_branch
          %490 = sbr.rel (%p488) target = $region122
        $region121: #{custom-call.10} parent=113 // pred_region
          %s491 = sand.u32 %s69, 1
          %s492 = sand.u32 %s69, 1
          %s493 = smul.addr %s492, 4
          %s494 = scalar_lea.vmem [#allocation6], %s493
        $region122: #{custom-call.10} parent=113 // pred_fallthru
          _
      $region114: #{custom-call.10} parent=5 // pred_fallthru
        _
    $region6: #{custom-call.10} parent=1 // loop_footer
      %s13 = sadd.s32 1, %s9
    $region7: #{custom-call.10} parent=1 // loop_footer_branch
      %8 = sbr.rel target = $region3
    $region8: #{custom-call.10} parent=1 // loop_exit
      _
    %495 = vsyncpa [#allocation4], 1
    %s496 = scalar_lea.sflag [#allocation4], 1
    %497 = vsyncpa %s496, 1

// kernel: custom-call.12
$region0: #{custom-call.12}
  %s0 = inlined_call_operand.vmem [shape: f32[2,4,1,9,9], index: 0, kind: input, shape index: {}]
  %s1 = inlined_call_operand.vmem [shape: f32[2,4,1,9,9], index: 1, kind: output, shape index: {}]
  $region1: #{custom-call.12} parent=0
    #allocation0 [shape = 'u8[16384]{0}', space=vmem, size = 0x4000, scoped, tag = 'operand span for operand 0']
    #allocation1 [shape = 'u8[16384]{0}', space=vmem, size = 0x4000, scoped, tag = 'operand span for operand 1']
    loop: start=0, step=1, limit=10
    $region2: #{custom-call.12} parent=1 // loop_pre_header
      _
    $region3: #{custom-call.12} parent=1 // loop_header
      %s3 = sphi 0, %s7
      %p4 = scmp.ge.s32.totalorder %s3, 10
      %s10 = sphi 0, %s43
      %s11 = sphi 0, %s39
      %s12 = sphi 0, %s35
      %s13 = sphi 0, %s31
      %s14 = sphi 0, %s27
      %s15 = sphi 0, %s10
      %s16 = sphi 0, %s11
      %s17 = sphi 0, %s12
      %s18 = sphi 0, %s13
      %s19 = sphi 0, %s14
      %s20 = sphi 0, %s15
      %s21 = sphi 0, %s16
      %s22 = sphi 0, %s17
      %s23 = sphi 0, %s18
      %s24 = sphi 0, %s19
    $region4: #{custom-call.12} parent=1 // loop_header_branch
      %6 = sbr.rel (%p4) target = $region8
    $region5: #{custom-call.12} parent=1 // loop_body
      %s8 = ssub.s32 %s3, 1
      %s9 = ssub.s32 %s3, 2
      %s25 = sadd.s32 1, %s14
      %p26 = scmp.ge.s32.totalorder %s25, 1
      %s27 = scalar_select %p26, 0, %s25
      %s28 = sadd.s32 1, %s13
      %s29 = scalar_select %p26, %s28, %s13
      %p30 = scmp.ge.s32.totalorder %s29, 1
      %s31 = scalar_select %p30, 0, %s29
      %s32 = sadd.s32 1, %s12
      %s33 = scalar_select %p30, %s32, %s12
      %p34 = scmp.ge.s32.totalorder %s33, 1
      %s35 = scalar_select %p34, 0, %s33
      %s36 = sadd.s32 1, %s11
      %s37 = scalar_select %p34, %s36, %s11
      %p38 = scmp.ge.s32.totalorder %s37, 4
      %s39 = scalar_select %p38, 0, %s37
      %s40 = sadd.s32 1, %s10
      %s41 = scalar_select %p38, %s40, %s10
      %p42 = scmp.ge.s32.totalorder %s41, 2
      %s43 = scalar_select %p42, 0, %s41
      %p44 = scmp.le.s32.totalorder 1, %s3
      %p45 = scmp.lt.s32.totalorder %s3, 9
      %p46 = pnand %p44, %p45
      %p47 = pneg %p46
      // Predicated region
      $region9: #{custom-call.12} parent=5 // pred_check
        _
      $region10: #{custom-call.12} parent=5 // pred_check_branch
        %49 = sbr.rel (%p46) target = $region12
      $region11: #{custom-call.12} parent=5 // pred_region
        %s50 = ssub.s32 %s3, 1
      $region12: #{custom-call.12} parent=5 // pred_fallthru
        _
      %p51 = scmp.lt.s32.totalorder %s3, 8
      // Predicated region
      $region13: #{custom-call.12} parent=5 // pred_check
        %p52 = pneg %p51
      $region14: #{custom-call.12} parent=5 // pred_check_branch
        %54 = sbr.rel (%p52) target = $region16
      $region15: #{custom-call.12} parent=5 // pred_region
        %s55 = sand.u32 %s3, 1
        %s56 = sand.u32 %s3, 1
        %s57 = smul.addr %s56, 16
        %s58 = scalar_lea.vmem [#allocation0], %s57
        %s59 = sadd.s32 %s14, %s13
        %s60 = smul.addr %s12, 2
        %s61 = sadd.s32 %s59, %s60
        %s62 = smul.addr %s11, 2
        %s63 = sadd.s32 %s61, %s62
        %s64 = smul.addr %s10, 8
        %s65 = sadd.s32 %s63, %s64
        %s66 = smul.addr %s65, 8
        %s67 = scalar_lea.vmem %s0, %s66
        // Predicated region
        $region17: #{custom-call.12} parent=15 // pred_check
          _
        $region18: #{custom-call.12} parent=15 // pred_check_branch
          %69 = sbr.rel (0) target = $region20
        $region19: #{custom-call.12} parent=15 // pred_region
          // Predicated region
          $region21: #{custom-call.12} parent=19 // pred_check
            _
          $region22: #{custom-call.12} parent=19 // pred_check_branch
            %71 = sbr.rel (0) target = $region24
          $region23: #{custom-call.12} parent=19 // pred_region
            // Predicated region
            $region36: #{custom-call.12} parent=23 // pred_check
              _
            $region37: #{custom-call.12} parent=23 // pred_check_branch
              %88 = sbr.rel (0) target = $region39
            $region38: #{custom-call.12} parent=23 // pred_region
              loop: start=0, step=1, limit=1
              $region40: #{custom-call.12} parent=38 // loop_pre_header
                _
              $region41: #{custom-call.12} parent=38 // loop_header
                %s90 = sphi 0, %s94
                %p91 = scmp.ge.s32.totalorder %s90, 1
                %s95 = sphi %s67, %s67
                %s96 = sphi %s58, %s58
              $region42: #{custom-call.12} parent=38 // loop_header_branch
                %93 = sbr.rel (%p91) target = $region46
              $region43: #{custom-call.12} parent=38 // loop_body
                %v97 = vld [vmem:[%s95] sm:$0xff]
                %98 = vst [vmem:[%s96] sm:$0xff] %v97
                %v99 = vld [vmem:[%s95 + $0x8] sm:$0xff]
                %100 = vst [vmem:[%s96 + $0x8] sm:$0xff] %v99
              $region44: #{custom-call.12} parent=38 // loop_footer
                %s94 = sadd.s32 1, %s90
              $region45: #{custom-call.12} parent=38 // loop_footer_branch
                %89 = sbr.rel target = $region41
              $region46: #{custom-call.12} parent=38 // loop_exit
                _
            $region39: #{custom-call.12} parent=23 // pred_fallthru
              _
            // Predicated region
            $region47: #{custom-call.12} parent=23 // pred_check
              _
            $region48: #{custom-call.12} parent=23 // pred_check_branch
              %102 = sbr.rel target = $region50
            $region49: #{custom-call.12} parent=23 // pred_region
              _
            $region50: #{custom-call.12} parent=23 // pred_fallthru
              _
          $region24: #{custom-call.12} parent=19 // pred_fallthru
            _
          // Predicated region
          $region25: #{custom-call.12} parent=19 // pred_check
            _
          $region26: #{custom-call.12} parent=19 // pred_check_branch
            %73 = sbr.rel target = $region28
          $region27: #{custom-call.12} parent=19 // pred_region
            loop: start=0, step=1, limit=1
            $region29: #{custom-call.12} parent=27 // loop_pre_header
              _
            $region30: #{custom-call.12} parent=27 // loop_header
              %s76 = sphi 0, %s80
              %p77 = scmp.ge.s32.totalorder %s76, 1
              %s81 = sphi %s67, %s67
              %s82 = sphi %s58, %s58
            $region31: #{custom-call.12} parent=27 // loop_header_branch
              %79 = sbr.rel (%p77) target = $region35
            $region32: #{custom-call.12} parent=27 // loop_body
              %v83 = vld [vmem:[%s81] sm:$0xff]
              %84 = vst [vmem:[%s82] sm:$0xff] %v83
              %v85 = vld [vmem:[%s81 + $0x8] sm:$0xff]
              %86 = vst [vmem:[%s82 + $0x8] sm:$0xff] %v85
            $region33: #{custom-call.12} parent=27 // loop_footer
              %s80 = sadd.s32 1, %s76
            $region34: #{custom-call.12} parent=27 // loop_footer_branch
              %75 = sbr.rel target = $region30
            $region35: #{custom-call.12} parent=27 // loop_exit
              _
          $region28: #{custom-call.12} parent=19 // pred_fallthru
            _
        $region20: #{custom-call.12} parent=15 // pred_fallthru
          _
        %103 = vnop
      $region16: #{custom-call.12} parent=5 // pred_fallthru
        _
      %p104 = scmp.le.s32.totalorder 1, %s3
      %p105 = scmp.lt.s32.totalorder %s3, 9
      %p106 = pnand %p104, %p105
      %p107 = pneg %p106
      // Predicated region
      $region51: #{custom-call.12} parent=5 // pred_check
        _
      $region52: #{custom-call.12} parent=5 // pred_check_branch
        %109 = sbr.rel (%p106) target = $region54
      $region53: #{custom-call.12} parent=5 // pred_region
        #allocation2 [shape = 'f32[9,9]{1,0}', space=vmem, size = 0x2000, scoped, tag = 'rescaled input a']
        %s110 = ssub.s32 %s3, 1
        %s111 = sand.u32 %s8, 1
        %s112 = sand.u32 %s8, 1
        %s113 = smul.addr %s112, 16
        %s114 = scalar_lea.vmem [#allocation0], %s113
        %s115 = sand.u32 %s8, 1
        %s116 = sand.u32 %s8, 1
        %s117 = smul.addr %s116, 16
        %s118 = scalar_lea.vmem [#allocation0], %s117
        %s119 = sand.u32 %s8, 1
        %s120 = sand.u32 %s8, 1
        %s121 = smul.addr %s120, 16
        %s122 = scalar_lea.vmem [#allocation1], %s121
        %v123 = vlaneseq
        %v124 = vand.u32 %v123, 127
        %vm125 = vcmp.lt.s32.totalorder %v124, 9
        %v126 = vlaneseq
        %v127 = vshrl.u32 %v126, 7
        %vm129 = vcmp.eq.s32.totalorder %v127, %v124
        %v130 = vld [vmem:[%s114] sm:$0xff]
        %v131 = vsel %vm129, %v130, 0.0
        %132 = vadd.xlane.f32.xlu0 %v131
        %v133 = vpop.xlane.xlu0 %132
        %vm134 = vcmp.ge.s32.totalorder %v127, %v124
        %vm135 = vmand %vm134, %vm125
        %v136 = vsel %vm135, %v130, 0.0
        %v137 = vrcp.pop %v133
        %v138 = vmul.f32 %v136, %v137
        %139 = vst [vmem:[#allocation2] sm:$0xff] %v138
        %s140 = scalar_lea.vmem %s114, 8 [#allocation0]
        %s141 = scalar_lea.vmem [#allocation2], 8
        %v142 = vlaneseq
        %v143 = vshrl.u32 %v142, 7
        %v144 = vadd.s32 %v143, 8
        %vm145 = vcmp.eq.s32.totalorder %v144, %v124
        %v146 = vld [vmem:[%s140] sm:$0xff]
        %v147 = vsel %vm145, %v146, 0.0
        %148 = vadd.xlane.f32.xlu0 %v147
        %v149 = vpop.xlane.xlu0 %148
        %vm150 = vcmp.ge.s32.totalorder %v144, %v124
        %vm151 = vmand %vm150, %vm125
        %v152 = vsel %vm151, %v146, 0.0
        %v153 = vrcp.pop %v149
        %v154 = vmul.f32 %v152, %v153
        %155 = vst [vmem:[%s141] sm:$0xff] %v154
        %v156 = vlaneseq
        %v157 = vand.u32 %v156, 127
        %v158 = vlaneseq
        %v159 = vshrl.u32 %v158, 7
        %vm161 = vcmp.eq.s32.totalorder %v157, %v159
        %v162 = vlaneseq
        %v163 = vand.u32 %v162, 127
        %vm164 = vcmp.eq.s32.totalorder %v163, 0
        %v165 = vsel %vm164, 1.0, -1.0
        %v166 = vsel %vm161, %v165, 0.0
        %v167 = vlaneseq
        %v168 = vand.u32 %v167, 127
        %v169 = vlaneseq
        %v170 = vshrl.u32 %v169, 7
        %v171 = vadd.s32 %v170, 8
        %vm172 = vcmp.eq.s32.totalorder %v168, %v171
        %v173 = vsel %vm172, -1.0, 0.0
        %s174 = scalar_lea.vmem [#allocation2], 1
        %v175 = vld [vmem:[%s174] ss:$0 sm:$0xff]
        %v176 = vxor.u32 %v175, 2147483648
        %v177 = vlaneseq
        %v178 = vand.u32 %v177, 127
        %vm179 = vcmp.eq.s32.totalorder %v178, 1
        %v180 = vmul.f32 %v176, %v166
        %181 = vadd.xlane.f32.xlu0 %v180
        %v182 = vpop.xlane.xlu0 %181
        %v183 = vsel %vm179, %v182, %v166
        %s184 = scalar_lea.vmem [#allocation2], 2
        %v185 = vld [vmem:[%s184] ss:$0 sm:$0xff]
        %v186 = vxor.u32 %v185, 2147483648
        %v187 = vlaneseq
        %v188 = vand.u32 %v187, 127
        %vm189 = vcmp.eq.s32.totalorder %v188, 2
        %v190 = vmul.f32 %v186, %v183
        %191 = vadd.xlane.f32.xlu0 %v190
        %v192 = vpop.xlane.xlu0 %191
        %v193 = vsel %vm189, %v192, %v183
        %s194 = scalar_lea.vmem [#allocation2], 3
        %v195 = vld [vmem:[%s194] ss:$0 sm:$0xff]
        %v196 = vxor.u32 %v195, 2147483648
        %v197 = vlaneseq
        %v198 = vand.u32 %v197, 127
        %vm199 = vcmp.eq.s32.totalorder %v198, 3
        %v200 = vmul.f32 %v196, %v193
        %201 = vadd.xlane.f32.xlu0 %v200
        %v202 = vpop.xlane.xlu0 %201
        %v203 = vsel %vm199, %v202, %v193
        %s204 = scalar_lea.vmem [#allocation2], 4
        %v205 = vld [vmem:[%s204] ss:$0 sm:$0xff]
        %v206 = vxor.u32 %v205, 2147483648
        %v207 = vlaneseq
        %v208 = vand.u32 %v207, 127
        %vm209 = vcmp.eq.s32.totalorder %v208, 4
        %v210 = vmul.f32 %v206, %v203
        %211 = vadd.xlane.f32.xlu0 %v210
        %v212 = vpop.xlane.xlu0 %211
        %v213 = vsel %vm209, %v212, %v203
        %s214 = scalar_lea.vmem [#allocation2], 5
        %v215 = vld [vmem:[%s214] ss:$0 sm:$0xff]
        %v216 = vxor.u32 %v215, 2147483648
        %v217 = vlaneseq
        %v218 = vand.u32 %v217, 127
        %vm219 = vcmp.eq.s32.totalorder %v218, 5
        %v220 = vmul.f32 %v216, %v213
        %221 = vadd.xlane.f32.xlu0 %v220
        %v222 = vpop.xlane.xlu0 %221
        %v223 = vsel %vm219, %v222, %v213
        %s224 = scalar_lea.vmem [#allocation2], 6
        %v225 = vld [vmem:[%s224] ss:$0 sm:$0xff]
        %v226 = vxor.u32 %v225, 2147483648
        %v227 = vlaneseq
        %v228 = vand.u32 %v227, 127
        %vm229 = vcmp.eq.s32.totalorder %v228, 6
        %v230 = vmul.f32 %v226, %v223
        %231 = vadd.xlane.f32.xlu0 %v230
        %v232 = vpop.xlane.xlu0 %231
        %v233 = vsel %vm229, %v232, %v223
        %s234 = scalar_lea.vmem [#allocation2], 7
        %v235 = vld [vmem:[%s234] ss:$0 sm:$0xff]
        %v236 = vxor.u32 %v235, 2147483648
        %v237 = vlaneseq
        %v238 = vand.u32 %v237, 127
        %vm239 = vcmp.eq.s32.totalorder %v238, 7
        %v240 = vmul.f32 %v236, %v233
        %241 = vadd.xlane.f32.xlu0 %v240
        %v242 = vpop.xlane.xlu0 %241
        %v243 = vsel %vm239, %v242, %v233
        %s244 = scalar_lea.vmem [#allocation2], 8
        %v245 = vld [vmem:[%s244] ss:$0 sm:$0xff]
        %v246 = vxor.u32 %v245, 2147483648
        %v247 = vlaneseq
        %v248 = vand.u32 %v247, 127
        %vm249 = vcmp.eq.s32.totalorder %v248, 8
        %v250 = vmul.f32 %v246, %v243
        %251 = vadd.xlane.f32.xlu0 %v250
        %v252 = vpop.xlane.xlu0 %251
        %v253 = vsel %vm249, %v252, %v243
        %v254 = vmul.f32 %v246, %v173
        %255 = vadd.xlane.f32.xlu0 %v254
        %v256 = vpop.xlane.xlu0 %255
        %v257 = vsel %vm249, %v256, %v173
        %v258 = vrcp.pop %v133
        %v259 = vmul.f32 %v253, %v258
        %vm260 = vweird.f32 %v133
        %v261 = vsel %vm260, %v253, %v259
        %262 = vst [vmem:[%s122] sm:$0xff] %v261
        %v263 = vrcp.pop %v149
        %v264 = vmul.f32 %v257, %v263
        %vm265 = vweird.f32 %v149
        %v266 = vsel %vm265, %v257, %v264
        %s267 = scalar_lea.vmem %s122, 8 [#allocation1]
        %268 = vst [vmem:[%s267] sm:$0xff] %v266
        %s269 = sand.u32 %s8, 1
        %s270 = sand.u32 %s8, 1
        %s271 = smul.addr %s270, 16
        %s272 = scalar_lea.vmem [#allocation1], %s271
        %s273 = sadd.s32 %s19, %s18
        %s274 = smul.addr %s17, 2
        %s275 = sadd.s32 %s273, %s274
        %s276 = smul.addr %s16, 2
        %s277 = sadd.s32 %s275, %s276
        %s278 = smul.addr %s15, 8
        %s279 = sadd.s32 %s277, %s278
        %s280 = smul.addr %s279, 8
        %s281 = scalar_lea.vmem %s1, %s280
        // Predicated region
        $region55: #{custom-call.12} parent=53 // pred_check
          _
        $region56: #{custom-call.12} parent=53 // pred_check_branch
          %283 = sbr.rel (0) target = $region58
        $region57: #{custom-call.12} parent=53 // pred_region
          // Predicated region
          $region59: #{custom-call.12} parent=57 // pred_check
            _
          $region60: #{custom-call.12} parent=57 // pred_check_branch
            %285 = sbr.rel (0) target = $region62
          $region61: #{custom-call.12} parent=57 // pred_region
            // Predicated region
            $region74: #{custom-call.12} parent=61 // pred_check
              _
            $region75: #{custom-call.12} parent=61 // pred_check_branch
              %302 = sbr.rel (0) target = $region77
            $region76: #{custom-call.12} parent=61 // pred_region
              loop: start=0, step=1, limit=1
              $region78: #{custom-call.12} parent=76 // loop_pre_header
                _
              $region79: #{custom-call.12} parent=76 // loop_header
                %s304 = sphi 0, %s308
                %p305 = scmp.ge.s32.totalorder %s304, 1
                %s309 = sphi %s272, %s272
                %s310 = sphi %s281, %s281
              $region80: #{custom-call.12} parent=76 // loop_header_branch
                %307 = sbr.rel (%p305) target = $region84
              $region81: #{custom-call.12} parent=76 // loop_body
                %v311 = vld [vmem:[%s309] sm:$0xff]
                %312 = vst [vmem:[%s310] sm:$0xff] %v311
                %v313 = vld [vmem:[%s309 + $0x8] sm:$0xff]
                %314 = vst [vmem:[%s310 + $0x8] sm:$0xff] %v313
              $region82: #{custom-call.12} parent=76 // loop_footer
                %s308 = sadd.s32 1, %s304
              $region83: #{custom-call.12} parent=76 // loop_footer_branch
                %303 = sbr.rel target = $region79
              $region84: #{custom-call.12} parent=76 // loop_exit
                _
            $region77: #{custom-call.12} parent=61 // pred_fallthru
              _
            // Predicated region
            $region85: #{custom-call.12} parent=61 // pred_check
              _
            $region86: #{custom-call.12} parent=61 // pred_check_branch
              %316 = sbr.rel target = $region88
            $region87: #{custom-call.12} parent=61 // pred_region
              _
            $region88: #{custom-call.12} parent=61 // pred_fallthru
              _
          $region62: #{custom-call.12} parent=57 // pred_fallthru
            _
          // Predicated region
          $region63: #{custom-call.12} parent=57 // pred_check
            _
          $region64: #{custom-call.12} parent=57 // pred_check_branch
            %287 = sbr.rel target = $region66
          $region65: #{custom-call.12} parent=57 // pred_region
            loop: start=0, step=1, limit=1
            $region67: #{custom-call.12} parent=65 // loop_pre_header
              _
            $region68: #{custom-call.12} parent=65 // loop_header
              %s290 = sphi 0, %s294
              %p291 = scmp.ge.s32.totalorder %s290, 1
              %s295 = sphi %s272, %s272
              %s296 = sphi %s281, %s281
            $region69: #{custom-call.12} parent=65 // loop_header_branch
              %293 = sbr.rel (%p291) target = $region73
            $region70: #{custom-call.12} parent=65 // loop_body
              %v297 = vld [vmem:[%s295] sm:$0xff]
              %298 = vst [vmem:[%s296] sm:$0xff] %v297
              %v299 = vld [vmem:[%s295 + $0x8] sm:$0xff]
              %300 = vst [vmem:[%s296 + $0x8] sm:$0xff] %v299
            $region71: #{custom-call.12} parent=65 // loop_footer
              %s294 = sadd.s32 1, %s290
            $region72: #{custom-call.12} parent=65 // loop_footer_branch
              %289 = sbr.rel target = $region68
            $region73: #{custom-call.12} parent=65 // loop_exit
              _
          $region66: #{custom-call.12} parent=57 // pred_fallthru
            _
        $region58: #{custom-call.12} parent=53 // pred_fallthru
          _
        %317 = vnop
      $region54: #{custom-call.12} parent=5 // pred_fallthru
        _
      %p318 = scmp.le.s32.totalorder 2, %s3
      // Predicated region
      $region89: #{custom-call.12} parent=5 // pred_check
        %p319 = pneg %p318
      $region90: #{custom-call.12} parent=5 // pred_check_branch
        %321 = sbr.rel (%p319) target = $region92
      $region91: #{custom-call.12} parent=5 // pred_region
        %s322 = ssub.s32 %s3, 2
        %s323 = sand.u32 %s9, 1
        %s324 = sand.u32 %s9, 1
        %s325 = smul.addr %s324, 16
        %s326 = scalar_lea.vmem [#allocation1], %s325
      $region92: #{custom-call.12} parent=5 // pred_fallthru
        _
    $region6: #{custom-call.12} parent=1 // loop_footer
      %s7 = sadd.s32 1, %s3
    $region7: #{custom-call.12} parent=1 // loop_footer_branch
      %2 = sbr.rel target = $region3
    $region8: #{custom-call.12} parent=1 // loop_exit
      _

// kernel: custom-call.11
$region0: #{custom-call.11}
  %s0 = inlined_call_operand.vmem [shape: f32[2,4,1,9,9], index: 0, kind: input, shape index: {}]
  %s1 = inlined_call_operand.vmem [shape: f32[2,4,1,9,9], index: 1, kind: output, shape index: {}]
  $region1: #{custom-call.11} parent=0
    #allocation0 [shape = 'u8[16384]{0}', space=vmem, size = 0x4000, scoped, tag = 'operand span for operand 0']
    #allocation1 [shape = 'u8[16384]{0}', space=vmem, size = 0x4000, scoped, tag = 'operand span for operand 1']
    loop: start=0, step=1, limit=10
    $region2: #{custom-call.11} parent=1 // loop_pre_header
      _
    $region3: #{custom-call.11} parent=1 // loop_header
      %s3 = sphi 0, %s7
      %p4 = scmp.ge.s32.totalorder %s3, 10
      %s10 = sphi 0, %s43
      %s11 = sphi 0, %s39
      %s12 = sphi 0, %s35
      %s13 = sphi 0, %s31
      %s14 = sphi 0, %s27
      %s15 = sphi 0, %s10
      %s16 = sphi 0, %s11
      %s17 = sphi 0, %s12
      %s18 = sphi 0, %s13
      %s19 = sphi 0, %s14
      %s20 = sphi 0, %s15
      %s21 = sphi 0, %s16
      %s22 = sphi 0, %s17
      %s23 = sphi 0, %s18
      %s24 = sphi 0, %s19
    $region4: #{custom-call.11} parent=1 // loop_header_branch
      %6 = sbr.rel (%p4) target = $region8
    $region5: #{custom-call.11} parent=1 // loop_body
      %s8 = ssub.s32 %s3, 1
      %s9 = ssub.s32 %s3, 2
      %s25 = sadd.s32 1, %s14
      %p26 = scmp.ge.s32.totalorder %s25, 1
      %s27 = scalar_select %p26, 0, %s25
      %s28 = sadd.s32 1, %s13
      %s29 = scalar_select %p26, %s28, %s13
      %p30 = scmp.ge.s32.totalorder %s29, 1
      %s31 = scalar_select %p30, 0, %s29
      %s32 = sadd.s32 1, %s12
      %s33 = scalar_select %p30, %s32, %s12
      %p34 = scmp.ge.s32.totalorder %s33, 1
      %s35 = scalar_select %p34, 0, %s33
      %s36 = sadd.s32 1, %s11
      %s37 = scalar_select %p34, %s36, %s11
      %p38 = scmp.ge.s32.totalorder %s37, 4
      %s39 = scalar_select %p38, 0, %s37
      %s40 = sadd.s32 1, %s10
      %s41 = scalar_select %p38, %s40, %s10
      %p42 = scmp.ge.s32.totalorder %s41, 2
      %s43 = scalar_select %p42, 0, %s41
      %p44 = scmp.le.s32.totalorder 1, %s3
      %p45 = scmp.lt.s32.totalorder %s3, 9
      %p46 = pnand %p44, %p45
      %p47 = pneg %p46
      // Predicated region
      $region9: #{custom-call.11} parent=5 // pred_check
        _
      $region10: #{custom-call.11} parent=5 // pred_check_branch
        %49 = sbr.rel (%p46) target = $region12
      $region11: #{custom-call.11} parent=5 // pred_region
        %s50 = ssub.s32 %s3, 1
      $region12: #{custom-call.11} parent=5 // pred_fallthru
        _
      %p51 = scmp.lt.s32.totalorder %s3, 8
      // Predicated region
      $region13: #{custom-call.11} parent=5 // pred_check
        %p52 = pneg %p51
      $region14: #{custom-call.11} parent=5 // pred_check_branch
        %54 = sbr.rel (%p52) target = $region16
      $region15: #{custom-call.11} parent=5 // pred_region
        %s55 = sand.u32 %s3, 1
        %s56 = sand.u32 %s3, 1
        %s57 = smul.addr %s56, 16
        %s58 = scalar_lea.vmem [#allocation0], %s57
        %s59 = sadd.s32 %s14, %s13
        %s60 = smul.addr %s12, 2
        %s61 = sadd.s32 %s59, %s60
        %s62 = smul.addr %s11, 2
        %s63 = sadd.s32 %s61, %s62
        %s64 = smul.addr %s10, 8
        %s65 = sadd.s32 %s63, %s64
        %s66 = smul.addr %s65, 8
        %s67 = scalar_lea.vmem %s0, %s66
        // Predicated region
        $region17: #{custom-call.11} parent=15 // pred_check
          _
        $region18: #{custom-call.11} parent=15 // pred_check_branch
          %69 = sbr.rel (0) target = $region20
        $region19: #{custom-call.11} parent=15 // pred_region
          // Predicated region
          $region21: #{custom-call.11} parent=19 // pred_check
            _
          $region22: #{custom-call.11} parent=19 // pred_check_branch
            %71 = sbr.rel (0) target = $region24
          $region23: #{custom-call.11} parent=19 // pred_region
            // Predicated region
            $region36: #{custom-call.11} parent=23 // pred_check
              _
            $region37: #{custom-call.11} parent=23 // pred_check_branch
              %88 = sbr.rel (0) target = $region39
            $region38: #{custom-call.11} parent=23 // pred_region
              loop: start=0, step=1, limit=1
              $region40: #{custom-call.11} parent=38 // loop_pre_header
                _
              $region41: #{custom-call.11} parent=38 // loop_header
                %s90 = sphi 0, %s94
                %p91 = scmp.ge.s32.totalorder %s90, 1
                %s95 = sphi %s67, %s67
                %s96 = sphi %s58, %s58
              $region42: #{custom-call.11} parent=38 // loop_header_branch
                %93 = sbr.rel (%p91) target = $region46
              $region43: #{custom-call.11} parent=38 // loop_body
                %v97 = vld [vmem:[%s95] sm:$0xff]
                %98 = vst [vmem:[%s96] sm:$0xff] %v97
                %v99 = vld [vmem:[%s95 + $0x8] sm:$0xff]
                %100 = vst [vmem:[%s96 + $0x8] sm:$0xff] %v99
              $region44: #{custom-call.11} parent=38 // loop_footer
                %s94 = sadd.s32 1, %s90
              $region45: #{custom-call.11} parent=38 // loop_footer_branch
                %89 = sbr.rel target = $region41
              $region46: #{custom-call.11} parent=38 // loop_exit
                _
            $region39: #{custom-call.11} parent=23 // pred_fallthru
              _
            // Predicated region
            $region47: #{custom-call.11} parent=23 // pred_check
              _
            $region48: #{custom-call.11} parent=23 // pred_check_branch
              %102 = sbr.rel target = $region50
            $region49: #{custom-call.11} parent=23 // pred_region
              _
            $region50: #{custom-call.11} parent=23 // pred_fallthru
              _
          $region24: #{custom-call.11} parent=19 // pred_fallthru
            _
          // Predicated region
          $region25: #{custom-call.11} parent=19 // pred_check
            _
          $region26: #{custom-call.11} parent=19 // pred_check_branch
            %73 = sbr.rel target = $region28
          $region27: #{custom-call.11} parent=19 // pred_region
            loop: start=0, step=1, limit=1
            $region29: #{custom-call.11} parent=27 // loop_pre_header
              _
            $region30: #{custom-call.11} parent=27 // loop_header
              %s76 = sphi 0, %s80
              %p77 = scmp.ge.s32.totalorder %s76, 1
              %s81 = sphi %s67, %s67
              %s82 = sphi %s58, %s58
            $region31: #{custom-call.11} parent=27 // loop_header_branch
              %79 = sbr.rel (%p77) target = $region35
            $region32: #{custom-call.11} parent=27 // loop_body
              %v83 = vld [vmem:[%s81] sm:$0xff]
              %84 = vst [vmem:[%s82] sm:$0xff] %v83
              %v85 = vld [vmem:[%s81 + $0x8] sm:$0xff]
              %86 = vst [vmem:[%s82 + $0x8] sm:$0xff] %v85
            $region33: #{custom-call.11} parent=27 // loop_footer
              %s80 = sadd.s32 1, %s76
            $region34: #{custom-call.11} parent=27 // loop_footer_branch
              %75 = sbr.rel target = $region30
            $region35: #{custom-call.11} parent=27 // loop_exit
              _
          $region28: #{custom-call.11} parent=19 // pred_fallthru
            _
        $region20: #{custom-call.11} parent=15 // pred_fallthru
          _
        %103 = vnop
      $region16: #{custom-call.11} parent=5 // pred_fallthru
        _
      %p104 = scmp.le.s32.totalorder 1, %s3
      %p105 = scmp.lt.s32.totalorder %s3, 9
      %p106 = pnand %p104, %p105
      %p107 = pneg %p106
      // Predicated region
      $region51: #{custom-call.11} parent=5 // pred_check
        _
      $region52: #{custom-call.11} parent=5 // pred_check_branch
        %109 = sbr.rel (%p106) target = $region54
      $region53: #{custom-call.11} parent=5 // pred_region
        #allocation2 [shape = 'f32[9,9]{1,0}', space=vmem, size = 0x2000, scoped, tag = 'rescaled input a']
        %s110 = ssub.s32 %s3, 1
        %s111 = sand.u32 %s8, 1
        %s112 = sand.u32 %s8, 1
        %s113 = smul.addr %s112, 16
        %s114 = scalar_lea.vmem [#allocation0], %s113
        %s115 = sand.u32 %s8, 1
        %s116 = sand.u32 %s8, 1
        %s117 = smul.addr %s116, 16
        %s118 = scalar_lea.vmem [#allocation0], %s117
        %s119 = sand.u32 %s8, 1
        %s120 = sand.u32 %s8, 1
        %s121 = smul.addr %s120, 16
        %s122 = scalar_lea.vmem [#allocation1], %s121
        %v123 = vlaneseq
        %v124 = vand.u32 %v123, 127
        %vm125 = vcmp.lt.s32.totalorder %v124, 9
        %v126 = vlaneseq
        %v127 = vshrl.u32 %v126, 7
        %vm129 = vcmp.eq.s32.totalorder %v127, %v124
        %v130 = vld [vmem:[%s114] sm:$0xff]
        %v131 = vsel %vm129, %v130, 0.0
        %132 = vadd.xlane.f32.xlu0 %v131
        %v133 = vpop.xlane.xlu0 %132
        %vm134 = vcmp.le.s32.totalorder %v127, %v124
        %vm135 = vmand %vm134, %vm125
        %v136 = vsel %vm135, %v130, 0.0
        %v137 = vrcp.pop %v133
        %v138 = vmul.f32 %v136, %v137
        %139 = vst [vmem:[#allocation2] sm:$0xff] %v138
        %s140 = scalar_lea.vmem %s114, 8 [#allocation0]
        %s141 = scalar_lea.vmem [#allocation2], 8
        %v142 = vlaneseq
        %v143 = vshrl.u32 %v142, 7
        %v144 = vadd.s32 %v143, 8
        %vm145 = vcmp.eq.s32.totalorder %v144, %v124
        %v146 = vld [vmem:[%s140] sm:$0xff]
        %v147 = vsel %vm145, %v146, 0.0
        %148 = vadd.xlane.f32.xlu0 %v147
        %v149 = vpop.xlane.xlu0 %148
        %vm150 = vcmp.le.s32.totalorder %v144, %v124
        %vm151 = vmand %vm150, %vm125
        %v152 = vsel %vm151, %v146, 0.0
        %v153 = vrcp.pop %v149
        %v154 = vmul.f32 %v152, %v153
        %155 = vst [vmem:[%s141] sm:$0xff] %v154
        %v156 = vlaneseq
        %v157 = vand.u32 %v156, 127
        %v158 = vlaneseq
        %v159 = vshrl.u32 %v158, 7
        %vm161 = vcmp.eq.s32.totalorder %v157, %v159
        %v162 = vsel %vm161, -1.0, 0.0
        %v163 = vlaneseq
        %v164 = vand.u32 %v163, 127
        %v165 = vlaneseq
        %v166 = vshrl.u32 %v165, 7
        %v167 = vadd.s32 %v166, 8
        %vm168 = vcmp.eq.s32.totalorder %v164, %v167
        %v169 = vlaneseq
        %v170 = vand.u32 %v169, 127
        %vm171 = vcmp.eq.s32.totalorder %v170, 8
        %v172 = vsel %vm171, 1.0, -1.0
        %v173 = vsel %vm168, %v172, 0.0
        %s174 = scalar_lea.vmem [#allocation2], 7
        %v175 = vld [vmem:[%s174] ss:$0 sm:$0xff]
        %v176 = vxor.u32 %v175, 2147483648
        %v177 = vlaneseq
        %v178 = vand.u32 %v177, 127
        %vm179 = vcmp.eq.s32.totalorder %v178, 7
        %v180 = vmul.f32 %v176, %v162
        %181 = vadd.xlane.f32.xlu0 %v180
        %v182 = vpop.xlane.xlu0 %181
        %v183 = vsel %vm179, %v182, %v162
        %v184 = vmul.f32 %v176, %v173
        %185 = vadd.xlane.f32.xlu0 %v184
        %v186 = vpop.xlane.xlu0 %185
        %v187 = vsel %vm179, %v186, %v173
        %s188 = scalar_lea.vmem [#allocation2], 6
        %v189 = vld [vmem:[%s188] ss:$0 sm:$0xff]
        %v190 = vxor.u32 %v189, 2147483648
        %v191 = vlaneseq
        %v192 = vand.u32 %v191, 127
        %vm193 = vcmp.eq.s32.totalorder %v192, 6
        %v194 = vmul.f32 %v190, %v183
        %195 = vadd.xlane.f32.xlu0 %v194
        %v196 = vpop.xlane.xlu0 %195
        %v197 = vsel %vm193, %v196, %v183
        %v198 = vmul.f32 %v190, %v187
        %199 = vadd.xlane.f32.xlu0 %v198
        %v200 = vpop.xlane.xlu0 %199
        %v201 = vsel %vm193, %v200, %v187
        %s202 = scalar_lea.vmem [#allocation2], 5
        %v203 = vld [vmem:[%s202] ss:$0 sm:$0xff]
        %v204 = vxor.u32 %v203, 2147483648
        %v205 = vlaneseq
        %v206 = vand.u32 %v205, 127
        %vm207 = vcmp.eq.s32.totalorder %v206, 5
        %v208 = vmul.f32 %v204, %v197
        %209 = vadd.xlane.f32.xlu0 %v208
        %v210 = vpop.xlane.xlu0 %209
        %v211 = vsel %vm207, %v210, %v197
        %v212 = vmul.f32 %v204, %v201
        %213 = vadd.xlane.f32.xlu0 %v212
        %v214 = vpop.xlane.xlu0 %213
        %v215 = vsel %vm207, %v214, %v201
        %s216 = scalar_lea.vmem [#allocation2], 4
        %v217 = vld [vmem:[%s216] ss:$0 sm:$0xff]
        %v218 = vxor.u32 %v217, 2147483648
        %v219 = vlaneseq
        %v220 = vand.u32 %v219, 127
        %vm221 = vcmp.eq.s32.totalorder %v220, 4
        %v222 = vmul.f32 %v218, %v211
        %223 = vadd.xlane.f32.xlu0 %v222
        %v224 = vpop.xlane.xlu0 %223
        %v225 = vsel %vm221, %v224, %v211
        %v226 = vmul.f32 %v218, %v215
        %227 = vadd.xlane.f32.xlu0 %v226
        %v228 = vpop.xlane.xlu0 %227
        %v229 = vsel %vm221, %v228, %v215
        %s230 = scalar_lea.vmem [#allocation2], 3
        %v231 = vld [vmem:[%s230] ss:$0 sm:$0xff]
        %v232 = vxor.u32 %v231, 2147483648
        %v233 = vlaneseq
        %v234 = vand.u32 %v233, 127
        %vm235 = vcmp.eq.s32.totalorder %v234, 3
        %v236 = vmul.f32 %v232, %v225
        %237 = vadd.xlane.f32.xlu0 %v236
        %v238 = vpop.xlane.xlu0 %237
        %v239 = vsel %vm235, %v238, %v225
        %v240 = vmul.f32 %v232, %v229
        %241 = vadd.xlane.f32.xlu0 %v240
        %v242 = vpop.xlane.xlu0 %241
        %v243 = vsel %vm235, %v242, %v229
        %s244 = scalar_lea.vmem [#allocation2], 2
        %v245 = vld [vmem:[%s244] ss:$0 sm:$0xff]
        %v246 = vxor.u32 %v245, 2147483648
        %v247 = vlaneseq
        %v248 = vand.u32 %v247, 127
        %vm249 = vcmp.eq.s32.totalorder %v248, 2
        %v250 = vmul.f32 %v246, %v239
        %251 = vadd.xlane.f32.xlu0 %v250
        %v252 = vpop.xlane.xlu0 %251
        %v253 = vsel %vm249, %v252, %v239
        %v254 = vmul.f32 %v246, %v243
        %255 = vadd.xlane.f32.xlu0 %v254
        %v256 = vpop.xlane.xlu0 %255
        %v257 = vsel %vm249, %v256, %v243
        %s258 = scalar_lea.vmem [#allocation2], 1
        %v259 = vld [vmem:[%s258] ss:$0 sm:$0xff]
        %v260 = vxor.u32 %v259, 2147483648
        %v261 = vlaneseq
        %v262 = vand.u32 %v261, 127
        %vm263 = vcmp.eq.s32.totalorder %v262, 1
        %v264 = vmul.f32 %v260, %v253
        %265 = vadd.xlane.f32.xlu0 %v264
        %v266 = vpop.xlane.xlu0 %265
        %v267 = vsel %vm263, %v266, %v253
        %v268 = vmul.f32 %v260, %v257
        %269 = vadd.xlane.f32.xlu0 %v268
        %v270 = vpop.xlane.xlu0 %269
        %v271 = vsel %vm263, %v270, %v257
        %v272 = vld [vmem:[#allocation2] ss:$0 sm:$0xff]
        %v273 = vxor.u32 %v272, 2147483648
        %v274 = vlaneseq
        %v275 = vand.u32 %v274, 127
        %vm276 = vcmp.eq.s32.totalorder %v275, 0
        %v277 = vmul.f32 %v273, %v267
        %278 = vadd.xlane.f32.xlu0 %v277
        %v279 = vpop.xlane.xlu0 %278
        %v280 = vsel %vm276, %v279, %v267
        %v281 = vmul.f32 %v273, %v271
        %282 = vadd.xlane.f32.xlu0 %v281
        %v283 = vpop.xlane.xlu0 %282
        %v284 = vsel %vm276, %v283, %v271
        %v285 = vrcp.pop %v133
        %v286 = vmul.f32 %v280, %v285
        %vm287 = vweird.f32 %v133
        %v288 = vsel %vm287, %v280, %v286
        %289 = vst [vmem:[%s122] sm:$0xff] %v288
        %v290 = vrcp.pop %v149
        %v291 = vmul.f32 %v284, %v290
        %vm292 = vweird.f32 %v149
        %v293 = vsel %vm292, %v284, %v291
        %s294 = scalar_lea.vmem %s122, 8 [#allocation1]
        %295 = vst [vmem:[%s294] sm:$0xff] %v293
        %s296 = sand.u32 %s8, 1
        %s297 = sand.u32 %s8, 1
        %s298 = smul.addr %s297, 16
        %s299 = scalar_lea.vmem [#allocation1], %s298
        %s300 = sadd.s32 %s19, %s18
        %s301 = smul.addr %s17, 2
        %s302 = sadd.s32 %s300, %s301
        %s303 = smul.addr %s16, 2
        %s304 = sadd.s32 %s302, %s303
        %s305 = smul.addr %s15, 8
        %s306 = sadd.s32 %s304, %s305
        %s307 = smul.addr %s306, 8
        %s308 = scalar_lea.vmem %s1, %s307
        // Predicated region
        $region55: #{custom-call.11} parent=53 // pred_check
          _
        $region56: #{custom-call.11} parent=53 // pred_check_branch
          %310 = sbr.rel (0) target = $region58
        $region57: #{custom-call.11} parent=53 // pred_region
          // Predicated region
          $region59: #{custom-call.11} parent=57 // pred_check
            _
          $region60: #{custom-call.11} parent=57 // pred_check_branch
            %312 = sbr.rel (0) target = $region62
          $region61: #{custom-call.11} parent=57 // pred_region
            // Predicated region
            $region74: #{custom-call.11} parent=61 // pred_check
              _
            $region75: #{custom-call.11} parent=61 // pred_check_branch
              %329 = sbr.rel (0) target = $region77
            $region76: #{custom-call.11} parent=61 // pred_region
              loop: start=0, step=1, limit=1
              $region78: #{custom-call.11} parent=76 // loop_pre_header
                _
              $region79: #{custom-call.11} parent=76 // loop_header
                %s331 = sphi 0, %s335
                %p332 = scmp.ge.s32.totalorder %s331, 1
                %s336 = sphi %s299, %s299
                %s337 = sphi %s308, %s308
              $region80: #{custom-call.11} parent=76 // loop_header_branch
                %334 = sbr.rel (%p332) target = $region84
              $region81: #{custom-call.11} parent=76 // loop_body
                %v338 = vld [vmem:[%s336] sm:$0xff]
                %339 = vst [vmem:[%s337] sm:$0xff] %v338
                %v340 = vld [vmem:[%s336 + $0x8] sm:$0xff]
                %341 = vst [vmem:[%s337 + $0x8] sm:$0xff] %v340
              $region82: #{custom-call.11} parent=76 // loop_footer
                %s335 = sadd.s32 1, %s331
              $region83: #{custom-call.11} parent=76 // loop_footer_branch
                %330 = sbr.rel target = $region79
              $region84: #{custom-call.11} parent=76 // loop_exit
                _
            $region77: #{custom-call.11} parent=61 // pred_fallthru
              _
            // Predicated region
            $region85: #{custom-call.11} parent=61 // pred_check
              _
            $region86: #{custom-call.11} parent=61 // pred_check_branch
              %343 = sbr.rel target = $region88
            $region87: #{custom-call.11} parent=61 // pred_region
              _
            $region88: #{custom-call.11} parent=61 // pred_fallthru
              _
          $region62: #{custom-call.11} parent=57 // pred_fallthru
            _
          // Predicated region
          $region63: #{custom-call.11} parent=57 // pred_check
            _
          $region64: #{custom-call.11} parent=57 // pred_check_branch
            %314 = sbr.rel target = $region66
          $region65: #{custom-call.11} parent=57 // pred_region
            loop: start=0, step=1, limit=1
            $region67: #{custom-call.11} parent=65 // loop_pre_header
              _
            $region68: #{custom-call.11} parent=65 // loop_header
              %s317 = sphi 0, %s321
              %p318 = scmp.ge.s32.totalorder %s317, 1
              %s322 = sphi %s299, %s299
              %s323 = sphi %s308, %s308
            $region69: #{custom-call.11} parent=65 // loop_header_branch
              %320 = sbr.rel (%p318) target = $region73
            $region70: #{custom-call.11} parent=65 // loop_body
              %v324 = vld [vmem:[%s322] sm:$0xff]
              %325 = vst [vmem:[%s323] sm:$0xff] %v324
              %v326 = vld [vmem:[%s322 + $0x8] sm:$0xff]
              %327 = vst [vmem:[%s323 + $0x8] sm:$0xff] %v326
            $region71: #{custom-call.11} parent=65 // loop_footer
              %s321 = sadd.s32 1, %s317
            $region72: #{custom-call.11} parent=65 // loop_footer_branch
              %316 = sbr.rel target = $region68
            $region73: #{custom-call.11} parent=65 // loop_exit
              _
          $region66: #{custom-call.11} parent=57 // pred_fallthru
            _
        $region58: #{custom-call.11} parent=53 // pred_fallthru
          _
        %344 = vnop
      $region54: #{custom-call.11} parent=5 // pred_fallthru
        _
      %p345 = scmp.le.s32.totalorder 2, %s3
      // Predicated region
      $region89: #{custom-call.11} parent=5 // pred_check
        %p346 = pneg %p345
      $region90: #{custom-call.11} parent=5 // pred_check_branch
        %348 = sbr.rel (%p346) target = $region92
      $region91: #{custom-call.11} parent=5 // pred_region
        %s349 = ssub.s32 %s3, 2
        %s350 = sand.u32 %s9, 1
        %s351 = sand.u32 %s9, 1
        %s352 = smul.addr %s351, 16
        %s353 = scalar_lea.vmem [#allocation1], %s352
      $region92: #{custom-call.11} parent=5 // pred_fallthru
        _
    $region6: #{custom-call.11} parent=1 // loop_footer
      %s7 = sadd.s32 1, %s3
    $region7: #{custom-call.11} parent=1 // loop_footer_branch
      %2 = sbr.rel target = $region3
    $region8: #{custom-call.11} parent=1 // loop_exit
      _

// kernel: custom-call.13
$region0: #{custom-call.13}
  %s0 = inlined_call_operand.vmem [shape: f32[2,4,9,9], index: 0, kind: input, shape index: {}]
  %s1 = inlined_call_operand.vmem [shape: f32[2,4,9,9], index: 1, kind: output, shape index: {}]
  $region1: #{custom-call.13} parent=0
    #allocation0 [shape = 'u8[16384]{0}', space=vmem, size = 0x4000, scoped, tag = 'operand span for operand 0']
    #allocation1 [shape = 'u8[16384]{0}', space=vmem, size = 0x4000, scoped, tag = 'operand span for operand 1']
    loop: start=0, step=1, limit=10
    $region2: #{custom-call.13} parent=1 // loop_pre_header
      _
    $region3: #{custom-call.13} parent=1 // loop_header
      %s3 = sphi 0, %s7
      %p4 = scmp.ge.s32.totalorder %s3, 10
      %s10 = sphi 0, %s36
      %s11 = sphi 0, %s32
      %s12 = sphi 0, %s28
      %s13 = sphi 0, %s24
      %s14 = sphi 0, %s10
      %s15 = sphi 0, %s11
      %s16 = sphi 0, %s12
      %s17 = sphi 0, %s13
      %s18 = sphi 0, %s14
      %s19 = sphi 0, %s15
      %s20 = sphi 0, %s16
      %s21 = sphi 0, %s17
    $region4: #{custom-call.13} parent=1 // loop_header_branch
      %6 = sbr.rel (%p4) target = $region8
    $region5: #{custom-call.13} parent=1 // loop_body
      %s8 = ssub.s32 %s3, 1
      %s9 = ssub.s32 %s3, 2
      %s22 = sadd.s32 1, %s13
      %p23 = scmp.ge.s32.totalorder %s22, 1
      %s24 = scalar_select %p23, 0, %s22
      %s25 = sadd.s32 1, %s12
      %s26 = scalar_select %p23, %s25, %s12
      %p27 = scmp.ge.s32.totalorder %s26, 1
      %s28 = scalar_select %p27, 0, %s26
      %s29 = sadd.s32 1, %s11
      %s30 = scalar_select %p27, %s29, %s11
      %p31 = scmp.ge.s32.totalorder %s30, 4
      %s32 = scalar_select %p31, 0, %s30
      %s33 = sadd.s32 1, %s10
      %s34 = scalar_select %p31, %s33, %s10
      %p35 = scmp.ge.s32.totalorder %s34, 2
      %s36 = scalar_select %p35, 0, %s34
      %p37 = scmp.le.s32.totalorder 1, %s3
      %p38 = scmp.lt.s32.totalorder %s3, 9
      %p39 = pnand %p37, %p38
      %p40 = pneg %p39
      // Predicated region
      $region9: #{custom-call.13} parent=5 // pred_check
        _
      $region10: #{custom-call.13} parent=5 // pred_check_branch
        %42 = sbr.rel (%p39) target = $region12
      $region11: #{custom-call.13} parent=5 // pred_region
        %s43 = ssub.s32 %s3, 1
      $region12: #{custom-call.13} parent=5 // pred_fallthru
        _
      %p44 = scmp.lt.s32.totalorder %s3, 8
      // Predicated region
      $region13: #{custom-call.13} parent=5 // pred_check
        %p45 = pneg %p44
      $region14: #{custom-call.13} parent=5 // pred_check_branch
        %47 = sbr.rel (%p45) target = $region16
      $region15: #{custom-call.13} parent=5 // pred_region
        %s48 = sand.u32 %s3, 1
        %s49 = sand.u32 %s3, 1
        %s50 = smul.addr %s49, 16
        %s51 = scalar_lea.vmem [#allocation0], %s50
        %s52 = sadd.s32 %s13, %s12
        %s53 = smul.addr %s11, 2
        %s54 = sadd.s32 %s52, %s53
        %s55 = smul.addr %s10, 8
        %s56 = sadd.s32 %s54, %s55
        %s57 = smul.addr %s56, 8
        %s58 = scalar_lea.vmem %s0, %s57
        // Predicated region
        $region17: #{custom-call.13} parent=15 // pred_check
          _
        $region18: #{custom-call.13} parent=15 // pred_check_branch
          %60 = sbr.rel (0) target = $region20
        $region19: #{custom-call.13} parent=15 // pred_region
          // Predicated region
          $region21: #{custom-call.13} parent=19 // pred_check
            _
          $region22: #{custom-call.13} parent=19 // pred_check_branch
            %62 = sbr.rel (0) target = $region24
          $region23: #{custom-call.13} parent=19 // pred_region
            // Predicated region
            $region36: #{custom-call.13} parent=23 // pred_check
              _
            $region37: #{custom-call.13} parent=23 // pred_check_branch
              %79 = sbr.rel (0) target = $region39
            $region38: #{custom-call.13} parent=23 // pred_region
              loop: start=0, step=1, limit=1
              $region40: #{custom-call.13} parent=38 // loop_pre_header
                _
              $region41: #{custom-call.13} parent=38 // loop_header
                %s81 = sphi 0, %s85
                %p82 = scmp.ge.s32.totalorder %s81, 1
                %s86 = sphi %s58, %s58
                %s87 = sphi %s51, %s51
              $region42: #{custom-call.13} parent=38 // loop_header_branch
                %84 = sbr.rel (%p82) target = $region46
              $region43: #{custom-call.13} parent=38 // loop_body
                %v88 = vld [vmem:[%s86] sm:$0xff]
                %89 = vst [vmem:[%s87] sm:$0xff] %v88
                %v90 = vld [vmem:[%s86 + $0x8] sm:$0xff]
                %91 = vst [vmem:[%s87 + $0x8] sm:$0xff] %v90
              $region44: #{custom-call.13} parent=38 // loop_footer
                %s85 = sadd.s32 1, %s81
              $region45: #{custom-call.13} parent=38 // loop_footer_branch
                %80 = sbr.rel target = $region41
              $region46: #{custom-call.13} parent=38 // loop_exit
                _
            $region39: #{custom-call.13} parent=23 // pred_fallthru
              _
            // Predicated region
            $region47: #{custom-call.13} parent=23 // pred_check
              _
            $region48: #{custom-call.13} parent=23 // pred_check_branch
              %93 = sbr.rel target = $region50
            $region49: #{custom-call.13} parent=23 // pred_region
              _
            $region50: #{custom-call.13} parent=23 // pred_fallthru
              _
          $region24: #{custom-call.13} parent=19 // pred_fallthru
            _
          // Predicated region
          $region25: #{custom-call.13} parent=19 // pred_check
            _
          $region26: #{custom-call.13} parent=19 // pred_check_branch
            %64 = sbr.rel target = $region28
          $region27: #{custom-call.13} parent=19 // pred_region
            loop: start=0, step=1, limit=1
            $region29: #{custom-call.13} parent=27 // loop_pre_header
              _
            $region30: #{custom-call.13} parent=27 // loop_header
              %s67 = sphi 0, %s71
              %p68 = scmp.ge.s32.totalorder %s67, 1
              %s72 = sphi %s58, %s58
              %s73 = sphi %s51, %s51
            $region31: #{custom-call.13} parent=27 // loop_header_branch
              %70 = sbr.rel (%p68) target = $region35
            $region32: #{custom-call.13} parent=27 // loop_body
              %v74 = vld [vmem:[%s72] sm:$0xff]
              %75 = vst [vmem:[%s73] sm:$0xff] %v74
              %v76 = vld [vmem:[%s72 + $0x8] sm:$0xff]
              %77 = vst [vmem:[%s73 + $0x8] sm:$0xff] %v76
            $region33: #{custom-call.13} parent=27 // loop_footer
              %s71 = sadd.s32 1, %s67
            $region34: #{custom-call.13} parent=27 // loop_footer_branch
              %66 = sbr.rel target = $region30
            $region35: #{custom-call.13} parent=27 // loop_exit
              _
          $region28: #{custom-call.13} parent=19 // pred_fallthru
            _
        $region20: #{custom-call.13} parent=15 // pred_fallthru
          _
        %94 = vnop
      $region16: #{custom-call.13} parent=5 // pred_fallthru
        _
      %p95 = scmp.le.s32.totalorder 1, %s3
      %p96 = scmp.lt.s32.totalorder %s3, 9
      %p97 = pnand %p95, %p96
      %p98 = pneg %p97
      // Predicated region
      $region51: #{custom-call.13} parent=5 // pred_check
        _
      $region52: #{custom-call.13} parent=5 // pred_check_branch
        %100 = sbr.rel (%p97) target = $region54
      $region53: #{custom-call.13} parent=5 // pred_region
        %s101 = ssub.s32 %s3, 1
        %s102 = sand.u32 %s8, 1
        %s103 = sand.u32 %s8, 1
        %s104 = smul.addr %s103, 16
        %s105 = scalar_lea.vmem [#allocation0], %s104
        %s106 = sand.u32 %s8, 1
        %s107 = sand.u32 %s8, 1
        %s108 = smul.addr %s107, 16
        %s109 = scalar_lea.vmem [#allocation0], %s108
        %s110 = sand.u32 %s8, 1
        %s111 = sand.u32 %s8, 1
        %s112 = smul.addr %s111, 16
        %s113 = scalar_lea.vmem [#allocation1], %s112
        %114 = vst [vmem:[%s113] sm:$0xff] 0.0
        %s115 = scalar_lea.vmem %s113, 8 [#allocation1]
        %116 = vst [vmem:[%s115] sm:$0xff] 0.0
        %vm117 = vcmask 7168
        %v118 = vld [vmem:[%s113] ss:$0 sm:$0xff]
        %v119 = vld [vmem:[%s105] ss:$0 sm:$0xff]
        %v120 = vmul.f32 %v118, %v118
        %121 = vadd.xlane.f32.xlu0 %v120
        %v122 = vpop.xlane.xlu0 %121
        %v123 = vsub.f32 %v119, %v122
        %v124 = vrsqrt.pop %v123
        %v125 = vld [vmem:[%s105] sm:$0xff]
        %v126 = vld [vmem:[%s113] sm:$0xff]
        %v127 = vmul.f32 %v126, %v118
        %128 = vadd.xlane.f32.xlu0 %v127
        %v129 = vpop.xlane.xlu0 %128
        %v130 = vsub.f32 %v125, %v129
        %v131 = vmul.f32 %v130, %v124
        %v132 = vsel %vm117, %v131, 0.0
        %v133 = vadd.f32 %v126, %v132
        %134 = vst [vmem:[%s113] sm:$0xff] %v133
        %s135 = scalar_lea.vmem %s105, 8 [#allocation0]
        %v136 = vld [vmem:[%s135] sm:$0xff]
        %s137 = scalar_lea.vmem %s113, 8 [#allocation1]
        %v138 = vld [vmem:[%s137] sm:$0xff]
        %v139 = vmul.f32 %v138, %v118
        %140 = vadd.xlane.f32.xlu0 %v139
        %v141 = vpop.xlane.xlu0 %140
        %v142 = vsub.f32 %v136, %v141
        %v143 = vmul.f32 %v142, %v124
        %v144 = vsel %vm117, %v143, 0.0
        %v145 = vadd.f32 %v138, %v144
        %s146 = scalar_lea.vmem %s113, 8 [#allocation1]
        %147 = vst [vmem:[%s146] sm:$0xff] %v145
        %vm148 = vcmask 15368
        %s149 = scalar_lea.vmem %s113, 1 [#allocation1]
        %v150 = vld [vmem:[%s149] ss:$0 sm:$0xff]
        %s151 = scalar_lea.vmem %s105, 1 [#allocation0]
        %v152 = vld [vmem:[%s151] ss:$0 sm:$0xff]
        %v153 = vmul.f32 %v150, %v150
        %154 = vadd.xlane.f32.xlu0 %v153
        %v155 = vpop.xlane.xlu0 %154
        %v156 = vsub.f32 %v152, %v155
        %v157 = vrsqrt.pop %v156
        %v158 = vld [vmem:[%s105] sm:$0xff]
        %v159 = vld [vmem:[%s113] sm:$0xff]
        %v160 = vmul.f32 %v159, %v150
        %161 = vadd.xlane.f32.xlu0 %v160
        %v162 = vpop.xlane.xlu0 %161
        %v163 = vsub.f32 %v158, %v162
        %v164 = vmul.f32 %v163, %v157
        %vm165 = vcmask 1047553
        %vm166 = vmand %vm148, %vm165
        %v167 = vsel %vm166, %v164, 0.0
        %v168 = vadd.f32 %v159, %v167
        %169 = vst [vmem:[%s113] sm:$0xff] %v168
        %s170 = scalar_lea.vmem %s105, 8 [#allocation0]
        %v171 = vld [vmem:[%s170] sm:$0xff]
        %s172 = scalar_lea.vmem %s113, 8 [#allocation1]
        %v173 = vld [vmem:[%s172] sm:$0xff]
        %v174 = vmul.f32 %v173, %v150
        %175 = vadd.xlane.f32.xlu0 %v174
        %v176 = vpop.xlane.xlu0 %175
        %v177 = vsub.f32 %v171, %v176
        %v178 = vmul.f32 %v177, %v157
        %v179 = vsel %vm148, %v178, 0.0
        %v180 = vadd.f32 %v173, %v179
        %s181 = scalar_lea.vmem %s113, 8 [#allocation1]
        %182 = vst [vmem:[%s181] sm:$0xff] %v180
        %vm183 = vcmask 23568
        %s184 = scalar_lea.vmem %s113, 2 [#allocation1]
        %v185 = vld [vmem:[%s184] ss:$0 sm:$0xff]
        %s186 = scalar_lea.vmem %s105, 2 [#allocation0]
        %v187 = vld [vmem:[%s186] ss:$0 sm:$0xff]
        %v188 = vmul.f32 %v185, %v185
        %189 = vadd.xlane.f32.xlu0 %v188
        %v190 = vpop.xlane.xlu0 %189
        %v191 = vsub.f32 %v187, %v190
        %v192 = vrsqrt.pop %v191
        %v193 = vld [vmem:[%s105] sm:$0xff]
        %v194 = vld [vmem:[%s113] sm:$0xff]
        %v195 = vmul.f32 %v194, %v185
        %196 = vadd.xlane.f32.xlu0 %v195
        %v197 = vpop.xlane.xlu0 %196
        %v198 = vsub.f32 %v193, %v197
        %v199 = vmul.f32 %v198, %v192
        %vm200 = vcmask 1047554
        %vm201 = vmand %vm183, %vm200
        %v202 = vsel %vm201, %v199, 0.0
        %v203 = vadd.f32 %v194, %v202
        %204 = vst [vmem:[%s113] sm:$0xff] %v203
        %s205 = scalar_lea.vmem %s105, 8 [#allocation0]
        %v206 = vld [vmem:[%s205] sm:$0xff]
        %s207 = scalar_lea.vmem %s113, 8 [#allocation1]
        %v208 = vld [vmem:[%s207] sm:$0xff]
        %v209 = vmul.f32 %v208, %v185
        %210 = vadd.xlane.f32.xlu0 %v209
        %v211 = vpop.xlane.xlu0 %210
        %v212 = vsub.f32 %v206, %v211
        %v213 = vmul.f32 %v212, %v192
        %v214 = vsel %vm183, %v213, 0.0
        %v215 = vadd.f32 %v208, %v214
        %s216 = scalar_lea.vmem %s113, 8 [#allocation1]
        %217 = vst [vmem:[%s216] sm:$0xff] %v215
        %vm218 = vcmask 31768
        %s219 = scalar_lea.vmem %s113, 3 [#allocation1]
        %v220 = vld [vmem:[%s219] ss:$0 sm:$0xff]
        %s221 = scalar_lea.vmem %s105, 3 [#allocation0]
        %v222 = vld [vmem:[%s221] ss:$0 sm:$0xff]
        %v223 = vmul.f32 %v220, %v220
        %224 = vadd.xlane.f32.xlu0 %v223
        %v225 = vpop.xlane.xlu0 %224
        %v226 = vsub.f32 %v222, %v225
        %v227 = vrsqrt.pop %v226
        %v228 = vld [vmem:[%s105] sm:$0xff]
        %v229 = vld [vmem:[%s113] sm:$0xff]
        %v230 = vmul.f32 %v229, %v220
        %231 = vadd.xlane.f32.xlu0 %v230
        %v232 = vpop.xlane.xlu0 %231
        %v233 = vsub.f32 %v228, %v232
        %v234 = vmul.f32 %v233, %v227
        %vm235 = vcmask 1047555
        %vm236 = vmand %vm218, %vm235
        %v237 = vsel %vm236, %v234, 0.0
        %v238 = vadd.f32 %v229, %v237
        %239 = vst [vmem:[%s113] sm:$0xff] %v238
        %s240 = scalar_lea.vmem %s105, 8 [#allocation0]
        %v241 = vld [vmem:[%s240] sm:$0xff]
        %s242 = scalar_lea.vmem %s113, 8 [#allocation1]
        %v243 = vld [vmem:[%s242] sm:$0xff]
        %v244 = vmul.f32 %v243, %v220
        %245 = vadd.xlane.f32.xlu0 %v244
        %v246 = vpop.xlane.xlu0 %245
        %v247 = vsub.f32 %v241, %v246
        %v248 = vmul.f32 %v247, %v227
        %v249 = vsel %vm218, %v248, 0.0
        %v250 = vadd.f32 %v243, %v249
        %s251 = scalar_lea.vmem %s113, 8 [#allocation1]
        %252 = vst [vmem:[%s251] sm:$0xff] %v250
        %vm253 = vcmask 39968
        %s254 = scalar_lea.vmem %s113, 4 [#allocation1]
        %v255 = vld [vmem:[%s254] ss:$0 sm:$0xff]
        %s256 = scalar_lea.vmem %s105, 4 [#allocation0]
        %v257 = vld [vmem:[%s256] ss:$0 sm:$0xff]
        %v258 = vmul.f32 %v255, %v255
        %259 = vadd.xlane.f32.xlu0 %v258
        %v260 = vpop.xlane.xlu0 %259
        %v261 = vsub.f32 %v257, %v260
        %v262 = vrsqrt.pop %v261
        %v263 = vld [vmem:[%s105] sm:$0xff]
        %v264 = vld [vmem:[%s113] sm:$0xff]
        %v265 = vmul.f32 %v264, %v255
        %266 = vadd.xlane.f32.xlu0 %v265
        %v267 = vpop.xlane.xlu0 %266
        %v268 = vsub.f32 %v263, %v267
        %v269 = vmul.f32 %v268, %v262
        %vm270 = vcmask 1047556
        %vm271 = vmand %vm253, %vm270
        %v272 = vsel %vm271, %v269, 0.0
        %v273 = vadd.f32 %v264, %v272
        %274 = vst [vmem:[%s113] sm:$0xff] %v273
        %s275 = scalar_lea.vmem %s105, 8 [#allocation0]
        %v276 = vld [vmem:[%s275] sm:$0xff]
        %s277 = scalar_lea.vmem %s113, 8 [#allocation1]
        %v278 = vld [vmem:[%s277] sm:$0xff]
        %v279 = vmul.f32 %v278, %v255
        %280 = vadd.xlane.f32.xlu0 %v279
        %v281 = vpop.xlane.xlu0 %280
        %v282 = vsub.f32 %v276, %v281
        %v283 = vmul.f32 %v282, %v262
        %v284 = vsel %vm253, %v283, 0.0
        %v285 = vadd.f32 %v278, %v284
        %s286 = scalar_lea.vmem %s113, 8 [#allocation1]
        %287 = vst [vmem:[%s286] sm:$0xff] %v285
        %vm288 = vcmask 48168
        %s289 = scalar_lea.vmem %s113, 5 [#allocation1]
        %v290 = vld [vmem:[%s289] ss:$0 sm:$0xff]
        %s291 = scalar_lea.vmem %s105, 5 [#allocation0]
        %v292 = vld [vmem:[%s291] ss:$0 sm:$0xff]
        %v293 = vmul.f32 %v290, %v290
        %294 = vadd.xlane.f32.xlu0 %v293
        %v295 = vpop.xlane.xlu0 %294
        %v296 = vsub.f32 %v292, %v295
        %v297 = vrsqrt.pop %v296
        %v298 = vld [vmem:[%s105] sm:$0xff]
        %v299 = vld [vmem:[%s113] sm:$0xff]
        %v300 = vmul.f32 %v299, %v290
        %301 = vadd.xlane.f32.xlu0 %v300
        %v302 = vpop.xlane.xlu0 %301
        %v303 = vsub.f32 %v298, %v302
        %v304 = vmul.f32 %v303, %v297
        %vm305 = vcmask 1047557
        %vm306 = vmand %vm288, %vm305
        %v307 = vsel %vm306, %v304, 0.0
        %v308 = vadd.f32 %v299, %v307
        %309 = vst [vmem:[%s113] sm:$0xff] %v308
        %s310 = scalar_lea.vmem %s105, 8 [#allocation0]
        %v311 = vld [vmem:[%s310] sm:$0xff]
        %s312 = scalar_lea.vmem %s113, 8 [#allocation1]
        %v313 = vld [vmem:[%s312] sm:$0xff]
        %v314 = vmul.f32 %v313, %v290
        %315 = vadd.xlane.f32.xlu0 %v314
        %v316 = vpop.xlane.xlu0 %315
        %v317 = vsub.f32 %v311, %v316
        %v318 = vmul.f32 %v317, %v297
        %v319 = vsel %vm288, %v318, 0.0
        %v320 = vadd.f32 %v313, %v319
        %s321 = scalar_lea.vmem %s113, 8 [#allocation1]
        %322 = vst [vmem:[%s321] sm:$0xff] %v320
        %vm323 = vcmask 56368
        %s324 = scalar_lea.vmem %s113, 6 [#allocation1]
        %v325 = vld [vmem:[%s324] ss:$0 sm:$0xff]
        %s326 = scalar_lea.vmem %s105, 6 [#allocation0]
        %v327 = vld [vmem:[%s326] ss:$0 sm:$0xff]
        %v328 = vmul.f32 %v325, %v325
        %329 = vadd.xlane.f32.xlu0 %v328
        %v330 = vpop.xlane.xlu0 %329
        %v331 = vsub.f32 %v327, %v330
        %v332 = vrsqrt.pop %v331
        %v333 = vld [vmem:[%s105] sm:$0xff]
        %v334 = vld [vmem:[%s113] sm:$0xff]
        %v335 = vmul.f32 %v334, %v325
        %336 = vadd.xlane.f32.xlu0 %v335
        %v337 = vpop.xlane.xlu0 %336
        %v338 = vsub.f32 %v333, %v337
        %v339 = vmul.f32 %v338, %v332
        %vm340 = vcmask 1047558
        %vm341 = vmand %vm323, %vm340
        %v342 = vsel %vm341, %v339, 0.0
        %v343 = vadd.f32 %v334, %v342
        %344 = vst [vmem:[%s113] sm:$0xff] %v343
        %s345 = scalar_lea.vmem %s105, 8 [#allocation0]
        %v346 = vld [vmem:[%s345] sm:$0xff]
        %s347 = scalar_lea.vmem %s113, 8 [#allocation1]
        %v348 = vld [vmem:[%s347] sm:$0xff]
        %v349 = vmul.f32 %v348, %v325
        %350 = vadd.xlane.f32.xlu0 %v349
        %v351 = vpop.xlane.xlu0 %350
        %v352 = vsub.f32 %v346, %v351
        %v353 = vmul.f32 %v352, %v332
        %v354 = vsel %vm323, %v353, 0.0
        %v355 = vadd.f32 %v348, %v354
        %s356 = scalar_lea.vmem %s113, 8 [#allocation1]
        %357 = vst [vmem:[%s356] sm:$0xff] %v355
        %vm358 = vcmask 64568
        %s359 = scalar_lea.vmem %s113, 7 [#allocation1]
        %v360 = vld [vmem:[%s359] ss:$0 sm:$0xff]
        %s361 = scalar_lea.vmem %s105, 7 [#allocation0]
        %v362 = vld [vmem:[%s361] ss:$0 sm:$0xff]
        %v363 = vmul.f32 %v360, %v360
        %364 = vadd.xlane.f32.xlu0 %v363
        %v365 = vpop.xlane.xlu0 %364
        %v366 = vsub.f32 %v362, %v365
        %v367 = vrsqrt.pop %v366
        %v368 = vld [vmem:[%s105] sm:$0xff]
        %v369 = vld [vmem:[%s113] sm:$0xff]
        %v370 = vmul.f32 %v369, %v360
        %371 = vadd.xlane.f32.xlu0 %v370
        %v372 = vpop.xlane.xlu0 %371
        %v373 = vsub.f32 %v368, %v372
        %v374 = vmul.f32 %v373, %v367
        %vm375 = vcmask 1047559
        %vm376 = vmand %vm358, %vm375
        %v377 = vsel %vm376, %v374, 0.0
        %v378 = vadd.f32 %v369, %v377
        %379 = vst [vmem:[%s113] sm:$0xff] %v378
        %s380 = scalar_lea.vmem %s105, 8 [#allocation0]
        %v381 = vld [vmem:[%s380] sm:$0xff]
        %s382 = scalar_lea.vmem %s113, 8 [#allocation1]
        %v383 = vld [vmem:[%s382] sm:$0xff]
        %v384 = vmul.f32 %v383, %v360
        %385 = vadd.xlane.f32.xlu0 %v384
        %v386 = vpop.xlane.xlu0 %385
        %v387 = vsub.f32 %v381, %v386
        %v388 = vmul.f32 %v387, %v367
        %v389 = vsel %vm358, %v388, 0.0
        %v390 = vadd.f32 %v383, %v389
        %s391 = scalar_lea.vmem %s113, 8 [#allocation1]
        %392 = vst [vmem:[%s391] sm:$0xff] %v390
        %vm393 = vcmask 72768
        %s394 = scalar_lea.vmem %s113, 8 [#allocation1]
        %v395 = vld [vmem:[%s394] ss:$0 sm:$0xff]
        %s396 = scalar_lea.vmem %s105, 8 [#allocation0]
        %v397 = vld [vmem:[%s396] ss:$0 sm:$0xff]
        %v398 = vmul.f32 %v395, %v395
        %399 = vadd.xlane.f32.xlu0 %v398
        %v400 = vpop.xlane.xlu0 %399
        %v401 = vsub.f32 %v397, %v400
        %v402 = vrsqrt.pop %v401
        %s403 = scalar_lea.vmem %s105, 8 [#allocation0]
        %v404 = vld [vmem:[%s403] sm:$0xff]
        %s405 = scalar_lea.vmem %s113, 8 [#allocation1]
        %v406 = vld [vmem:[%s405] sm:$0xff]
        %v407 = vmul.f32 %v406, %v395
        %408 = vadd.xlane.f32.xlu0 %v407
        %v409 = vpop.xlane.xlu0 %408
        %v410 = vsub.f32 %v404, %v409
        %v411 = vmul.f32 %v410, %v402
        %v412 = vsel %vm393, %v411, 0.0
        %v413 = vadd.f32 %v406, %v412
        %s414 = scalar_lea.vmem %s113, 8 [#allocation1]
        %415 = vst [vmem:[%s414] sm:$0xff] %v413
        %s416 = sand.u32 %s8, 1
        %s417 = sand.u32 %s8, 1
        %s418 = smul.addr %s417, 16
        %s419 = scalar_lea.vmem [#allocation1], %s418
        %s420 = sadd.s32 %s17, %s16
        %s421 = smul.addr %s15, 2
        %s422 = sadd.s32 %s420, %s421
        %s423 = smul.addr %s14, 8
        %s424 = sadd.s32 %s422, %s423
        %s425 = smul.addr %s424, 8
        %s426 = scalar_lea.vmem %s1, %s425
        // Predicated region
        $region55: #{custom-call.13} parent=53 // pred_check
          _
        $region56: #{custom-call.13} parent=53 // pred_check_branch
          %428 = sbr.rel (0) target = $region58
        $region57: #{custom-call.13} parent=53 // pred_region
          // Predicated region
          $region59: #{custom-call.13} parent=57 // pred_check
            _
          $region60: #{custom-call.13} parent=57 // pred_check_branch
            %430 = sbr.rel (0) target = $region62
          $region61: #{custom-call.13} parent=57 // pred_region
            // Predicated region
            $region74: #{custom-call.13} parent=61 // pred_check
              _
            $region75: #{custom-call.13} parent=61 // pred_check_branch
              %447 = sbr.rel (0) target = $region77
            $region76: #{custom-call.13} parent=61 // pred_region
              loop: start=0, step=1, limit=1
              $region78: #{custom-call.13} parent=76 // loop_pre_header
                _
              $region79: #{custom-call.13} parent=76 // loop_header
                %s449 = sphi 0, %s453
                %p450 = scmp.ge.s32.totalorder %s449, 1
                %s454 = sphi %s419, %s419
                %s455 = sphi %s426, %s426
              $region80: #{custom-call.13} parent=76 // loop_header_branch
                %452 = sbr.rel (%p450) target = $region84
              $region81: #{custom-call.13} parent=76 // loop_body
                %v456 = vld [vmem:[%s454] sm:$0xff]
                %457 = vst [vmem:[%s455] sm:$0xff] %v456
                %v458 = vld [vmem:[%s454 + $0x8] sm:$0xff]
                %459 = vst [vmem:[%s455 + $0x8] sm:$0xff] %v458
              $region82: #{custom-call.13} parent=76 // loop_footer
                %s453 = sadd.s32 1, %s449
              $region83: #{custom-call.13} parent=76 // loop_footer_branch
                %448 = sbr.rel target = $region79
              $region84: #{custom-call.13} parent=76 // loop_exit
                _
            $region77: #{custom-call.13} parent=61 // pred_fallthru
              _
            // Predicated region
            $region85: #{custom-call.13} parent=61 // pred_check
              _
            $region86: #{custom-call.13} parent=61 // pred_check_branch
              %461 = sbr.rel target = $region88
            $region87: #{custom-call.13} parent=61 // pred_region
              _
            $region88: #{custom-call.13} parent=61 // pred_fallthru
              _
          $region62: #{custom-call.13} parent=57 // pred_fallthru
            _
          // Predicated region
          $region63: #{custom-call.13} parent=57 // pred_check
            _
          $region64: #{custom-call.13} parent=57 // pred_check_branch
            %432 = sbr.rel target = $region66
          $region65: #{custom-call.13} parent=57 // pred_region
            loop: start=0, step=1, limit=1
            $region67: #{custom-call.13} parent=65 // loop_pre_header
              _
            $region68: #{custom-call.13} parent=65 // loop_header
              %s435 = sphi 0, %s439
              %p436 = scmp.ge.s32.totalorder %s435, 1
              %s440 = sphi %s419, %s419
              %s441 = sphi %s426, %s426
            $region69: #{custom-call.13} parent=65 // loop_header_branch
              %438 = sbr.rel (%p436) target = $region73
            $region70: #{custom-call.13} parent=65 // loop_body
              %v442 = vld [vmem:[%s440] sm:$0xff]
              %443 = vst [vmem:[%s441] sm:$0xff] %v442
              %v444 = vld [vmem:[%s440 + $0x8] sm:$0xff]
              %445 = vst [vmem:[%s441 + $0x8] sm:$0xff] %v444
            $region71: #{custom-call.13} parent=65 // loop_footer
              %s439 = sadd.s32 1, %s435
            $region72: #{custom-call.13} parent=65 // loop_footer_branch
              %434 = sbr.rel target = $region68
            $region73: #{custom-call.13} parent=65 // loop_exit
              _
          $region66: #{custom-call.13} parent=57 // pred_fallthru
            _
        $region58: #{custom-call.13} parent=53 // pred_fallthru
          _
        %462 = vnop
      $region54: #{custom-call.13} parent=5 // pred_fallthru
        _
      %p463 = scmp.le.s32.totalorder 2, %s3
      // Predicated region
      $region89: #{custom-call.13} parent=5 // pred_check
        %p464 = pneg %p463
      $region90: #{custom-call.13} parent=5 // pred_check_branch
        %466 = sbr.rel (%p464) target = $region92
      $region91: #{custom-call.13} parent=5 // pred_region
        %s467 = ssub.s32 %s3, 2
        %s468 = sand.u32 %s9, 1
        %s469 = sand.u32 %s9, 1
        %s470 = smul.addr %s469, 16
        %s471 = scalar_lea.vmem [#allocation1], %s470
      $region92: #{custom-call.13} parent=5 // pred_fallthru
        _
    $region6: #{custom-call.13} parent=1 // loop_footer
      %s7 = sadd.s32 1, %s3
    $region7: #{custom-call.13} parent=1 // loop_footer_branch
      %2 = sbr.rel target = $region3
    $region8: #{custom-call.13} parent=1 // loop_exit
      _

</llo_original>
